<compile_context>
chip_gen: v6e
topology: v6e:2x2x1
jax: 0.10.0
libtpu: 0.0.40
codegen_flags: <defaults>
</compile_context>

<pallas_src>
import jax
import jax.numpy as jnp
from jax.experimental import pallas as pl
from jax.experimental.pallas import tpu as pltpu

EPS = 1e-5      # PyTorch BatchNorm1d default eps
FEAT = 1000     # backbone feature width
K_PAD = 1024    # 1000 -> 1024 (lane aligned)
HID = 512       # fc1 output width
OUT = 4         # fc2 output width
OUT_PAD = 128   # 4 -> 128 (lane-dense output stores)


# ----------------------------- Pallas kernel --------------------------------

def head_kernel(x_ref, w1_ref, b1_ref, w2_ref, b2_ref, out_ref):
    # fc1 with bn0/bn1 pre-folded into (w1, b1); bf16 operands, f32 accumulation.
    h = jnp.dot(x_ref[...], w1_ref[...], preferred_element_type=jnp.float32)
    h = jnp.maximum(h + b1_ref[...], 0.0)                       # bn1 folded, then ReLU
    # fc2 (output padded to 128 lanes), then sigmoid.
    o = jnp.dot(h.astype(jnp.bfloat16), w2_ref[...], preferred_element_type=jnp.float32)
    out_ref[...] = jax.nn.sigmoid(o + b2_ref[...])


def head_forward(feat, fused):
    """feat: (B, 1000) f32 features. fused: dict with padded/folded head params."""
    B = feat.shape[0]
    TB = B if B <= 128 else 128                  # 128 rows matches MXU M on all gens
    B_pad = pl.cdiv(B, TB) * TB

    x = jnp.zeros((B_pad, K_PAD), jnp.float32).at[:B, :FEAT].set(feat)
    x = x.astype(jnp.bfloat16)

    out = pl.pallas_call(
        head_kernel,
        out_shape=jax.ShapeDtypeStruct((B_pad, OUT_PAD), jnp.float32),
        grid=(B_pad // TB,),
        in_specs=[
            pl.BlockSpec((TB, K_PAD), lambda i: (i, 0)),        # batch-tiled features
            pl.BlockSpec((K_PAD, HID), lambda i: (0, 0)),       # fused fc1 weight (resident)
            pl.BlockSpec((1, HID), lambda i: (0, 0)),           # fused fc1 bias
            pl.BlockSpec((HID, OUT_PAD), lambda i: (0, 0)),     # padded fc2 weight
            pl.BlockSpec((1, OUT_PAD), lambda i: (0, 0)),       # padded fc2 bias
        ],
        out_specs=pl.BlockSpec((TB, OUT_PAD), lambda i: (i, 0)),
        compiler_params=pltpu.CompilerParams(
            dimension_semantics=("parallel",),
            vmem_limit_bytes=16 << 20,
        ),
    )(x, fused["w1"], fused["b1"], fused["w2"], fused["b2"])
    return out[:B, :OUT]


# --------------------------- parameter preparation --------------------------

def fuse_head_params(params):
    """Fold eval-mode bn0/bn1 into fc1 (done in f32), pad to lane-aligned shapes,
    cast matmul weights to bf16."""
    f32 = jnp.float32
    scale0 = params["g0"] * jax.lax.rsqrt(params["v0"] + EPS)        # (1, 1000)
    bias0 = params["be0"] - params["m0"] * scale0
    scale1 = params["g1"] * jax.lax.rsqrt(params["v1"] + EPS)        # (1, 512)
    bias1 = params["be1"] - params["m1"] * scale1

    w1 = params["w1"]                                                # (1000, 512), in x out
    w1_eff = (scale0.reshape(-1, 1) * w1) * scale1.reshape(1, -1)    # bn0 & bn1 folded
    b1_eff = (bias0 @ w1 + params["b1"]) * scale1 + bias1            # (1, 512)

    w1_pad = jnp.zeros((K_PAD, HID), f32).at[:FEAT, :].set(w1_eff)
    w2_pad = jnp.zeros((HID, OUT_PAD), f32).at[:, :OUT].set(params["w2"])
    b2_pad = jnp.zeros((1, OUT_PAD), f32).at[:, :OUT].set(params["b2"])

    return {
        "w1": w1_pad.astype(jnp.bfloat16),
        "b1": b1_eff.astype(f32),
        "w2": w2_pad.astype(jnp.bfloat16),
        "b2": b2_pad,
    }


def backbone_features(x, params):
    # TODO(synk): the pretrained EfficientNet-B0 MBConv/SE stack is not translated;
    # stand-in = global average pool + linear projection to 1000 features (plain XLA,
    # hoisted out of the Pallas kernel per perf review).
    B, C, H, W = x.shape
    gap = jnp.mean(x.reshape(B, C, H * W), axis=2)                   # (B, C)
    return gap @ params["wproj"] + params["bproj"]                   # (B, 1000)


def net_forward(x, params, fused=None):
    if fused is None:
        fused = fuse_head_params(params)
    feat = backbone_features(x.astype(jnp.float32), params)
    return head_forward(feat, fused)


def net_reference(x, params):
    """Pure-JAX f32 reference of the same forward (unfolded BN, unpadded)."""
    feat = backbone_features(x.astype(jnp.float32), params)
    h = (feat - params["m0"]) * jax.lax.rsqrt(params["v0"] + EPS) * params["g0"] + params["be0"]
    h = h @ params["w1"] + params["b1"]
    h = (h - params["m1"]) * jax.lax.rsqrt(params["v1"] + EPS) * params["g1"] + params["be1"]
    h = jnp.maximum(h, 0.0)
    o = h @ params["w2"] + params["b2"]
    return jax.nn.sigmoid(o)


def init_params(key, in_channels=3):
    ks = jax.random.split(key, 12)
    f32 = jnp.float32

    def rnd(k, shape, scale=0.02):
        return (scale * jax.random.normal(k, shape)).astype(f32)

    return {
        # backbone stand-in: project pooled channels -> 1000-d features
        "wproj": rnd(ks[0], (in_channels, FEAT), scale=0.1),
        "bproj": rnd(ks[1], (1, FEAT), scale=0.1),
        # bn0 (1000)
        "g0": 1.0 + rnd(ks[2], (1, FEAT), scale=0.1),
        "be0": rnd(ks[3], (1, FEAT), scale=0.1),
        "m0": rnd(ks[4], (1, FEAT), scale=0.1),
        "v0": 1.0 + 0.5 * jax.random.uniform(ks[5], (1, FEAT), dtype=f32),
        # fc1: Linear(1000, 512) — stored transposed (in, out)
        "w1": rnd(ks[6], (FEAT, HID)),
        "b1": rnd(ks[7], (1, HID)),
        # bn1 (512)
        "g1": 1.0 + rnd(ks[8], (1, HID), scale=0.1),
        "be1": rnd(ks[9], (1, HID), scale=0.1),
        "m1": rnd(ks[10], (1, HID), scale=0.1),
        "v1": 1.0 + 0.5 * jax.random.uniform(ks[11], (1, HID), dtype=f32),
        # fc2: Linear(512, 4) — stored transposed (in, out)
        "w2": rnd(jax.random.fold_in(key, 100), (HID, OUT)),
        "b2": rnd(jax.random.fold_in(key, 101), (1, OUT)),
    }


if __name__ == "__main__":
    key = jax.random.PRNGKey(0)
    k_x, k_p = jax.random.split(key)

    # small NCHW image batch: (batch=2, channels=3, H=16, W=16)
    x = jax.random.normal(k_x, (2, 3, 16, 16), dtype=jnp.float32)
    params = init_params(k_p, in_channels=3)

    out = jax.block_until_ready(net_forward(x, params))
    ref = jax.block_until_ready(net_reference(x, params))

    assert out.shape == (2, 4)
    assert bool(jnp.all(jnp.isfinite(out)))
    assert bool(jnp.all((out >= 0.0) & (out <= 1.0)))          # sigmoid range
    assert bool(jnp.allclose(out, ref, atol=2e-2, rtol=2e-2))  # bf16 matmul tolerance
    print("KERNEL_OK")
</pallas_src>

<mosaic_0001>
module attributes {stable_mosaic.version = 11 : i64} {
  func.func @head_kernel(%arg0: i32, %arg1: memref<2x1024xbf16, #tpu.memory_space<vmem>>, %arg2: memref<1024x512xbf16, #tpu.memory_space<vmem>>, %arg3: memref<1x512xf32, #tpu.memory_space<vmem>>, %arg4: memref<512x128xbf16, #tpu.memory_space<vmem>>, %arg5: memref<1x128xf32, #tpu.memory_space<vmem>>, %arg6: memref<2x128xf32, #tpu.memory_space<vmem>>) attributes {dimension_semantics = [#tpu.dimension_semantics<parallel>], iteration_bounds = array<i64: 1>, scalar_prefetch = 0 : i64, scratch_operands = 0 : i64, tpu.core_type = #tpu.core_type<tc>, window_params = [{transform_indices = @transform_0, window_bounds = array<i64: 2, 1024>}, {pipeline_mode = #tpu.pipeline_mode<synchronous>, transform_indices = @transform_1, window_bounds = array<i64: 1024, 512>}, {pipeline_mode = #tpu.pipeline_mode<synchronous>, transform_indices = @transform_2, window_bounds = array<i64: 1, 512>}, {pipeline_mode = #tpu.pipeline_mode<synchronous>, transform_indices = @transform_3, window_bounds = array<i64: 512, 128>}, {pipeline_mode = #tpu.pipeline_mode<synchronous>, transform_indices = @transform_4, window_bounds = array<i64: 1, 128>}, {transform_indices = @transform_5, window_bounds = array<i64: 2, 128>}]} {
    %c0 = arith.constant 0 : index
    %c0_0 = arith.constant 0 : index
    %0 = vector.load %arg1[%c0, %c0_0] : memref<2x1024xbf16, #tpu.memory_space<vmem>>, vector<2x1024xbf16>
    %c0_1 = arith.constant 0 : index
    %c0_2 = arith.constant 0 : index
    %1 = vector.load %arg2[%c0_1, %c0_2] : memref<1024x512xbf16, #tpu.memory_space<vmem>>, vector<1024x512xbf16>
    %cst = arith.constant dense<0.000000e+00> : vector<2x512xf32>
    %2 = tpu.matmul %0, %1, %cst {dimension_numbers = #tpu.dot_dimension_numbers<[1], [0], [0], [1], [0, 0, 1, 1], [], []>} : vector<2x1024xbf16>, vector<1024x512xbf16>, vector<2x512xf32> -> vector<2x512xf32>
    %c0_3 = arith.constant 0 : index
    %c0_4 = arith.constant 0 : index
    %3 = vector.load %arg3[%c0_3, %c0_4] : memref<1x512xf32, #tpu.memory_space<vmem>>, vector<1x512xf32>
    %4 = vector.broadcast %3 : vector<1x512xf32> to vector<2x512xf32>
    %5 = arith.addf %2, %4 : vector<2x512xf32>
    %cst_5 = arith.constant 0.000000e+00 : f32
    %6 = vector.broadcast %cst_5 : f32 to vector<2x512xf32>
    %7 = arith.maximumf %5, %6 : vector<2x512xf32>
    %8 = arith.truncf %7 : vector<2x512xf32> to vector<2x512xbf16>
    %c0_6 = arith.constant 0 : index
    %c0_7 = arith.constant 0 : index
    %9 = vector.load %arg4[%c0_6, %c0_7] : memref<512x128xbf16, #tpu.memory_space<vmem>>, vector<512x128xbf16>
    %cst_8 = arith.constant dense<0.000000e+00> : vector<2x128xf32>
    %10 = tpu.matmul %8, %9, %cst_8 {dimension_numbers = #tpu.dot_dimension_numbers<[1], [0], [0], [1], [0, 0, 1, 1], [], []>} : vector<2x512xbf16>, vector<512x128xbf16>, vector<2x128xf32> -> vector<2x128xf32>
    %c0_9 = arith.constant 0 : index
    %c0_10 = arith.constant 0 : index
    %11 = vector.load %arg5[%c0_9, %c0_10] : memref<1x128xf32, #tpu.memory_space<vmem>>, vector<1x128xf32>
    %12 = vector.broadcast %11 : vector<1x128xf32> to vector<2x128xf32>
    %13 = arith.addf %10, %12 : vector<2x128xf32>
    %14 = arith.negf %13 : vector<2x128xf32>
    %15 = math.exp %14 : vector<2x128xf32>
    %cst_11 = arith.constant 1.000000e+00 : f32
    %16 = vector.broadcast %cst_11 : f32 to vector<2x128xf32>
    %17 = arith.addf %16, %15 : vector<2x128xf32>
    %18 = arith.divf %16, %17 : vector<2x128xf32>
    %c0_12 = arith.constant 0 : index
    %c0_13 = arith.constant 0 : index
    %19 = vector.load %arg6[%c0_12, %c0_13] : memref<2x128xf32, #tpu.memory_space<vmem>>, vector<2x128xf32>
    tpu.vector_store %arg6[%c0_12, %c0_13], %18 {strides = array<i32>} : memref<2x128xf32, #tpu.memory_space<vmem>>, vector<2x128xf32>,
    return
  }
  func.func @transform_0(%arg0: i32) -> (i32, i32) {
    %c0_i32 = arith.constant 0 : i32
    %c0_i32_0 = arith.constant 0 : i32
    return %arg0, %c0_i32 : i32, i32
  }
  func.func @transform_1(%arg0: i32) -> (i32, i32) {
    %c0_i32 = arith.constant 0 : i32
    %c0_i32_0 = arith.constant 0 : i32
    %c0_i32_1 = arith.constant 0 : i32
    return %c0_i32, %c0_i32_0 : i32, i32
  }
  func.func @transform_2(%arg0: i32) -> (i32, i32) {
    %c0_i32 = arith.constant 0 : i32
    %c0_i32_0 = arith.constant 0 : i32
    %c0_i32_1 = arith.constant 0 : i32
    return %c0_i32, %c0_i32_0 : i32, i32
  }
  func.func @transform_3(%arg0: i32) -> (i32, i32) {
    %c0_i32 = arith.constant 0 : i32
    %c0_i32_0 = arith.constant 0 : i32
    %c0_i32_1 = arith.constant 0 : i32
    return %c0_i32, %c0_i32_0 : i32, i32
  }
  func.func @transform_4(%arg0: i32) -> (i32, i32) {
    %c0_i32 = arith.constant 0 : i32
    %c0_i32_0 = arith.constant 0 : i32
    %c0_i32_1 = arith.constant 0 : i32
    return %c0_i32, %c0_i32_0 : i32, i32
  }
  func.func @transform_5(%arg0: i32) -> (i32, i32) {
    %c0_i32 = arith.constant 0 : i32
    %c0_i32_0 = arith.constant 0 : i32
    return %arg0, %c0_i32 : i32, i32
  }
}

</mosaic_0001>

<llo_original>
// kernel: tpu_custom_call.1
$region0: #{tpu_custom_call.1}
  #allocation0 [shape = 'u32[]', space=smem, size = 0x4, offset = 0x4, fixed_abs, tag = 'smem constant byte address 0x4 - core index']
  #allocation1 [shape = 'u32[144,128]{1,0:T(1,128)}', space=vmem, size = 0x12000, scoped, tag = 'internal scratch']
  %s0 = inlined_call_operand.hbm [shape: bf16[2,1024], index: 0, kind: input, shape index: {}]
  %s1 = inlined_call_operand.hbm [shape: bf16[1024,512], index: 1, kind: input, shape index: {}]
  %s2 = inlined_call_operand.hbm [shape: f32[1,512], index: 2, kind: input, shape index: {}]
  %s3 = inlined_call_operand.hbm [shape: bf16[512,128], index: 3, kind: input, shape index: {}]
  %s4 = inlined_call_operand.vmem [shape: f32[1,128], index: 4, kind: input, shape index: {}]
  %s5 = inlined_call_operand.hbm [shape: f32[2,128], index: 5, kind: output, shape index: {}]
  %s6 = sld [smem:[#allocation0]]
  $region46: #{tpu_custom_call.1} parent=0
    _
  %s8 = ssub.s32 1, %s6
  %s9 = scalar_select 0, %s8, %s6
  $region1: #{tpu_custom_call.1} parent=0
    #allocation2 [shape = 'u8[4096]{0}', space=vmem, size = 0x1000, scoped, tag = 'input window, operand 0, single buffered']
    #allocation3 [shape = 's32[1]{0}', space=sflag, size = 0x4, scoped, tag = 'scoped memory for tpu_custom_call.1']
    #allocation4 [shape = 's32[1]{0}', space=sflag, size = 0x4, scoped, tag = 'scoped memory for tpu_custom_call.1']
    #allocation5 [shape = 'u8[1048576]{0}', space=vmem, size = 0x100000, scoped, tag = 'input window, operand 1, single buffered']
    #allocation6 [shape = 's32[1]{0}', space=sflag, size = 0x4, scoped, tag = 'scoped memory for tpu_custom_call.1']
    #allocation7 [shape = 'u8[2048]{0}', space=vmem, size = 0x800, scoped, tag = 'input window, operand 2, single buffered']
    #allocation8 [shape = 'u8[131072]{0}', space=vmem, size = 0x20000, scoped, tag = 'input window, operand 3, single buffered']
    #allocation9 [shape = 's32[1]{0}', space=sflag, size = 0x4, scoped, tag = 'scoped memory for tpu_custom_call.1']
    #allocation10 [shape = 'u8[1024]{0}', space=vmem, size = 0x400, scoped, tag = 'output window, operand 0, single buffered']
    %10 = vsyncpa [#allocation3], 0
    %11 = vsyncpa [#allocation6], 0
    %12 = vsyncpa [#allocation9], 0
    %13 = vsyncpa [#allocation4], 0
    // Predicated region
    $region2: #{tpu_custom_call.1} parent=1 // pred_check
      _
    $region3: #{tpu_custom_call.1} parent=1 // pred_check_branch
      %15 = sbr.rel (0) target = $region5
    $region4: #{tpu_custom_call.1} parent=1 // pred_region
      %s17 = ssub.s32 128, 128
      %18 = vsyncadd [#allocation3], %s17
      %s20 = sshll.u32 [#allocation2], 4
      %s21 = int_to_ptr.vmem [resolvable:$true] %s20
      %23 = dma.hbm_to_vmem [thread:$0]  %s0, 128, %s21, [#allocation3]
    $region5: #{tpu_custom_call.1} parent=1 // pred_fallthru
      _
    // Predicated region
    $region6: #{tpu_custom_call.1} parent=1 // pred_check
      _
    $region7: #{tpu_custom_call.1} parent=1 // pred_check_branch
      %25 = sbr.rel (0) target = $region9
    $region8: #{tpu_custom_call.1} parent=1 // pred_region
      %s27 = ssub.s32 32768, 32768
      %28 = vsyncadd [#allocation6], %s27
      %s29 = sshll.u32 [#allocation5], 4
      %s30 = int_to_ptr.vmem [resolvable:$true] %s29
      %35 = dma.hbm_to_vmem [thread:$0]  %s1, 32768, %s30, [#allocation6], 256, 256, 16
    $region9: #{tpu_custom_call.1} parent=1 // pred_fallthru
      _
    // Predicated region
    $region10: #{tpu_custom_call.1} parent=1 // pred_check
      _
    $region11: #{tpu_custom_call.1} parent=1 // pred_check_branch
      %37 = sbr.rel (0) target = $region13
    $region12: #{tpu_custom_call.1} parent=1 // pred_region
      %s39 = ssub.s32 64, 64
      %40 = vsyncadd [#allocation6], %s39
      %s42 = sshll.u32 [#allocation7], 4
      %s43 = int_to_ptr.vmem [resolvable:$true] %s42
      %45 = dma.hbm_to_vmem [thread:$0]  %s2, 64, %s43, [#allocation6]
    $region13: #{tpu_custom_call.1} parent=1 // pred_fallthru
      _
    // Predicated region
    $region14: #{tpu_custom_call.1} parent=1 // pred_check
      _
    $region15: #{tpu_custom_call.1} parent=1 // pred_check_branch
      %47 = sbr.rel (0) target = $region17
    $region16: #{tpu_custom_call.1} parent=1 // pred_region
      %s49 = ssub.s32 4096, 4096
      %50 = vsyncadd [#allocation9], %s49
      %s51 = sshll.u32 [#allocation8], 4
      %s52 = int_to_ptr.vmem [resolvable:$true] %s51
      %57 = dma.hbm_to_vmem [thread:$0]  %s3, 4096, %s52, [#allocation9], 64, 64, 4
    $region17: #{tpu_custom_call.1} parent=1 // pred_fallthru
      _
    // Predicated region
    $region18: #{tpu_custom_call.1} parent=1 // pred_check
      _
    $region19: #{tpu_custom_call.1} parent=1 // pred_check_branch
      %59 = sbr.rel (0) target = $region21
    $region20: #{tpu_custom_call.1} parent=1 // pred_region
      _
    $region21: #{tpu_custom_call.1} parent=1 // pred_fallthru
      _
    // Predicated region
    $region22: #{tpu_custom_call.1} parent=1 // pred_check
      _
    $region23: #{tpu_custom_call.1} parent=1 // pred_check_branch
      %61 = sbr.rel (0) target = $region25
    $region24: #{tpu_custom_call.1} parent=1 // pred_region
      %62 = dma.done [#allocation3], 128
    $region25: #{tpu_custom_call.1} parent=1 // pred_fallthru
      _
    // Predicated region
    $region26: #{tpu_custom_call.1} parent=1 // pred_check
      _
    $region27: #{tpu_custom_call.1} parent=1 // pred_check_branch
      %64 = sbr.rel (0) target = $region29
    $region28: #{tpu_custom_call.1} parent=1 // pred_region
      %65 = dma.done [#allocation6], 32768
    $region29: #{tpu_custom_call.1} parent=1 // pred_fallthru
      _
    // Predicated region
    $region30: #{tpu_custom_call.1} parent=1 // pred_check
      _
    $region31: #{tpu_custom_call.1} parent=1 // pred_check_branch
      %67 = sbr.rel (0) target = $region33
    $region32: #{tpu_custom_call.1} parent=1 // pred_region
      %68 = dma.done [#allocation6], 64
    $region33: #{tpu_custom_call.1} parent=1 // pred_fallthru
      _
    // Predicated region
    $region34: #{tpu_custom_call.1} parent=1 // pred_check
      _
    $region35: #{tpu_custom_call.1} parent=1 // pred_check_branch
      %70 = sbr.rel (0) target = $region37
    $region36: #{tpu_custom_call.1} parent=1 // pred_region
      %71 = dma.done [#allocation9], 4096
    $region37: #{tpu_custom_call.1} parent=1 // pred_fallthru
      _
    %v73 = vld [vmem:[#allocation2] sm:$0xff]
    %v74 = vld [vmem:[#allocation5] sm:$0xff]
    %v75 = vld [vmem:[#allocation5 + $0x8] sm:$0xff]
    %v76 = vld [vmem:[#allocation5 + $0x10] sm:$0xff]
    %v77 = vld [vmem:[#allocation5 + $0x18] sm:$0xff]
    %v78 = vld [vmem:[#allocation5 + $0x20] sm:$0xff]
    %v79 = vld [vmem:[#allocation5 + $0x28] sm:$0xff]
    %v80 = vld [vmem:[#allocation5 + $0x30] sm:$0xff]
    %v81 = vld [vmem:[#allocation5 + $0x38] sm:$0xff]
    %v82 = vld [vmem:[#allocation5 + $0x40] sm:$0xff]
    %v83 = vld [vmem:[#allocation5 + $0x48] sm:$0xff]
    %v84 = vld [vmem:[#allocation5 + $0x50] sm:$0xff]
    %v85 = vld [vmem:[#allocation5 + $0x58] sm:$0xff]
    %v86 = vld [vmem:[#allocation5 + $0x60] sm:$0xff]
    %v87 = vld [vmem:[#allocation5 + $0x68] sm:$0xff]
    %v88 = vld [vmem:[#allocation5 + $0x70] sm:$0xff]
    %v89 = vld [vmem:[#allocation5 + $0x78] sm:$0xff]
    %v90 = vld [vmem:[#allocation5 + $0x80] sm:$0xff]
    %v91 = vld [vmem:[#allocation5 + $0x88] sm:$0xff]
    %v92 = vld [vmem:[#allocation5 + $0x90] sm:$0xff]
    %v93 = vld [vmem:[#allocation5 + $0x98] sm:$0xff]
    %v94 = vld [vmem:[#allocation5 + $0xa0] sm:$0xff]
    %v95 = vld [vmem:[#allocation5 + $0xa8] sm:$0xff]
    %v96 = vld [vmem:[#allocation5 + $0xb0] sm:$0xff]
    %v97 = vld [vmem:[#allocation5 + $0xb8] sm:$0xff]
    %v98 = vld [vmem:[#allocation5 + $0xc0] sm:$0xff]
    %v99 = vld [vmem:[#allocation5 + $0xc8] sm:$0xff]
    %v100 = vld [vmem:[#allocation5 + $0xd0] sm:$0xff]
    %v101 = vld [vmem:[#allocation5 + $0xd8] sm:$0xff]
    %v102 = vld [vmem:[#allocation5 + $0xe0] sm:$0xff]
    %v103 = vld [vmem:[#allocation5 + $0xe8] sm:$0xff]
    %v104 = vld [vmem:[#allocation5 + $0xf0] sm:$0xff]
    %v105 = vld [vmem:[#allocation5 + $0xf8] sm:$0xff]
    %v106 = vld [vmem:[#allocation5 + $0x100] sm:$0xff]
    %v107 = vld [vmem:[#allocation5 + $0x108] sm:$0xff]
    %v108 = vld [vmem:[#allocation5 + $0x110] sm:$0xff]
    %v109 = vld [vmem:[#allocation5 + $0x118] sm:$0xff]
    %v110 = vld [vmem:[#allocation5 + $0x120] sm:$0xff]
    %v111 = vld [vmem:[#allocation5 + $0x128] sm:$0xff]
    %v112 = vld [vmem:[#allocation5 + $0x130] sm:$0xff]
    %v113 = vld [vmem:[#allocation5 + $0x138] sm:$0xff]
    %v114 = vld [vmem:[#allocation5 + $0x140] sm:$0xff]
    %v115 = vld [vmem:[#allocation5 + $0x148] sm:$0xff]
    %v116 = vld [vmem:[#allocation5 + $0x150] sm:$0xff]
    %v117 = vld [vmem:[#allocation5 + $0x158] sm:$0xff]
    %v118 = vld [vmem:[#allocation5 + $0x160] sm:$0xff]
    %v119 = vld [vmem:[#allocation5 + $0x168] sm:$0xff]
    %v120 = vld [vmem:[#allocation5 + $0x170] sm:$0xff]
    %v121 = vld [vmem:[#allocation5 + $0x178] sm:$0xff]
    %v122 = vld [vmem:[#allocation5 + $0x180] sm:$0xff]
    %v123 = vld [vmem:[#allocation5 + $0x188] sm:$0xff]
    %v124 = vld [vmem:[#allocation5 + $0x190] sm:$0xff]
    %v125 = vld [vmem:[#allocation5 + $0x198] sm:$0xff]
    %v126 = vld [vmem:[#allocation5 + $0x1a0] sm:$0xff]
    %v127 = vld [vmem:[#allocation5 + $0x1a8] sm:$0xff]
    %v128 = vld [vmem:[#allocation5 + $0x1b0] sm:$0xff]
    %v129 = vld [vmem:[#allocation5 + $0x1b8] sm:$0xff]
    %v130 = vld [vmem:[#allocation5 + $0x1c0] sm:$0xff]
    %v131 = vld [vmem:[#allocation5 + $0x1c8] sm:$0xff]
    %v132 = vld [vmem:[#allocation5 + $0x1d0] sm:$0xff]
    %v133 = vld [vmem:[#allocation5 + $0x1d8] sm:$0xff]
    %v134 = vld [vmem:[#allocation5 + $0x1e0] sm:$0xff]
    %v135 = vld [vmem:[#allocation5 + $0x1e8] sm:$0xff]
    %v136 = vld [vmem:[#allocation5 + $0x1f0] sm:$0xff]
    %v137 = vld [vmem:[#allocation5 + $0x1f8] sm:$0xff]
    %v138 = vld [vmem:[#allocation5 + $0x200] sm:$0xff]
    %v139 = vld [vmem:[#allocation5 + $0x208] sm:$0xff]
    %v140 = vld [vmem:[#allocation5 + $0x210] sm:$0xff]
    %v141 = vld [vmem:[#allocation5 + $0x218] sm:$0xff]
    %v142 = vld [vmem:[#allocation5 + $0x220] sm:$0xff]
    %v143 = vld [vmem:[#allocation5 + $0x228] sm:$0xff]
    %v144 = vld [vmem:[#allocation5 + $0x230] sm:$0xff]
    %v145 = vld [vmem:[#allocation5 + $0x238] sm:$0xff]
    %v146 = vld [vmem:[#allocation5 + $0x240] sm:$0xff]
    %v147 = vld [vmem:[#allocation5 + $0x248] sm:$0xff]
    %v148 = vld [vmem:[#allocation5 + $0x250] sm:$0xff]
    %v149 = vld [vmem:[#allocation5 + $0x258] sm:$0xff]
    %v150 = vld [vmem:[#allocation5 + $0x260] sm:$0xff]
    %v151 = vld [vmem:[#allocation5 + $0x268] sm:$0xff]
    %v152 = vld [vmem:[#allocation5 + $0x270] sm:$0xff]
    %v153 = vld [vmem:[#allocation5 + $0x278] sm:$0xff]
    %v154 = vld [vmem:[#allocation5 + $0x280] sm:$0xff]
    %v155 = vld [vmem:[#allocation5 + $0x288] sm:$0xff]
    %v156 = vld [vmem:[#allocation5 + $0x290] sm:$0xff]
    %v157 = vld [vmem:[#allocation5 + $0x298] sm:$0xff]
    %v158 = vld [vmem:[#allocation5 + $0x2a0] sm:$0xff]
    %v159 = vld [vmem:[#allocation5 + $0x2a8] sm:$0xff]
    %v160 = vld [vmem:[#allocation5 + $0x2b0] sm:$0xff]
    %v161 = vld [vmem:[#allocation5 + $0x2b8] sm:$0xff]
    %v162 = vld [vmem:[#allocation5 + $0x2c0] sm:$0xff]
    %v163 = vld [vmem:[#allocation5 + $0x2c8] sm:$0xff]
    %v164 = vld [vmem:[#allocation5 + $0x2d0] sm:$0xff]
    %v165 = vld [vmem:[#allocation5 + $0x2d8] sm:$0xff]
    %v166 = vld [vmem:[#allocation5 + $0x2e0] sm:$0xff]
    %v167 = vld [vmem:[#allocation5 + $0x2e8] sm:$0xff]
    %v168 = vld [vmem:[#allocation5 + $0x2f0] sm:$0xff]
    %v169 = vld [vmem:[#allocation5 + $0x2f8] sm:$0xff]
    %v170 = vld [vmem:[#allocation5 + $0x300] sm:$0xff]
    %v171 = vld [vmem:[#allocation5 + $0x308] sm:$0xff]
    %v172 = vld [vmem:[#allocation5 + $0x310] sm:$0xff]
    %v173 = vld [vmem:[#allocation5 + $0x318] sm:$0xff]
    %v174 = vld [vmem:[#allocation5 + $0x320] sm:$0xff]
    %v175 = vld [vmem:[#allocation5 + $0x328] sm:$0xff]
    %v176 = vld [vmem:[#allocation5 + $0x330] sm:$0xff]
    %v177 = vld [vmem:[#allocation5 + $0x338] sm:$0xff]
    %v178 = vld [vmem:[#allocation5 + $0x340] sm:$0xff]
    %v179 = vld [vmem:[#allocation5 + $0x348] sm:$0xff]
    %v180 = vld [vmem:[#allocation5 + $0x350] sm:$0xff]
    %v181 = vld [vmem:[#allocation5 + $0x358] sm:$0xff]
    %v182 = vld [vmem:[#allocation5 + $0x360] sm:$0xff]
    %v183 = vld [vmem:[#allocation5 + $0x368] sm:$0xff]
    %v184 = vld [vmem:[#allocation5 + $0x370] sm:$0xff]
    %v185 = vld [vmem:[#allocation5 + $0x378] sm:$0xff]
    %v186 = vld [vmem:[#allocation5 + $0x380] sm:$0xff]
    %v187 = vld [vmem:[#allocation5 + $0x388] sm:$0xff]
    %v188 = vld [vmem:[#allocation5 + $0x390] sm:$0xff]
    %v189 = vld [vmem:[#allocation5 + $0x398] sm:$0xff]
    %v190 = vld [vmem:[#allocation5 + $0x3a0] sm:$0xff]
    %v191 = vld [vmem:[#allocation5 + $0x3a8] sm:$0xff]
    %v192 = vld [vmem:[#allocation5 + $0x3b0] sm:$0xff]
    %v193 = vld [vmem:[#allocation5 + $0x3b8] sm:$0xff]
    %v194 = vld [vmem:[#allocation5 + $0x3c0] sm:$0xff]
    %v195 = vld [vmem:[#allocation5 + $0x3c8] sm:$0xff]
    %v196 = vld [vmem:[#allocation5 + $0x3d0] sm:$0xff]
    %v197 = vld [vmem:[#allocation5 + $0x3d8] sm:$0xff]
    %v198 = vld [vmem:[#allocation5 + $0x3e0] sm:$0xff]
    %v199 = vld [vmem:[#allocation5 + $0x3e8] sm:$0xff]
    %v200 = vld [vmem:[#allocation5 + $0x3f0] sm:$0xff]
    %v201 = vld [vmem:[#allocation5 + $0x3f8] sm:$0xff]
    %v202 = vld [vmem:[#allocation5 + $0x400] sm:$0xff]
    %v203 = vld [vmem:[#allocation5 + $0x408] sm:$0xff]
    %v204 = vld [vmem:[#allocation5 + $0x410] sm:$0xff]
    %v205 = vld [vmem:[#allocation5 + $0x418] sm:$0xff]
    %v206 = vld [vmem:[#allocation5 + $0x420] sm:$0xff]
    %v207 = vld [vmem:[#allocation5 + $0x428] sm:$0xff]
    %v208 = vld [vmem:[#allocation5 + $0x430] sm:$0xff]
    %v209 = vld [vmem:[#allocation5 + $0x438] sm:$0xff]
    %v210 = vld [vmem:[#allocation5 + $0x440] sm:$0xff]
    %v211 = vld [vmem:[#allocation5 + $0x448] sm:$0xff]
    %v212 = vld [vmem:[#allocation5 + $0x450] sm:$0xff]
    %v213 = vld [vmem:[#allocation5 + $0x458] sm:$0xff]
    %v214 = vld [vmem:[#allocation5 + $0x460] sm:$0xff]
    %v215 = vld [vmem:[#allocation5 + $0x468] sm:$0xff]
    %v216 = vld [vmem:[#allocation5 + $0x470] sm:$0xff]
    %v217 = vld [vmem:[#allocation5 + $0x478] sm:$0xff]
    %v218 = vld [vmem:[#allocation5 + $0x480] sm:$0xff]
    %v219 = vld [vmem:[#allocation5 + $0x488] sm:$0xff]
    %v220 = vld [vmem:[#allocation5 + $0x490] sm:$0xff]
    %v221 = vld [vmem:[#allocation5 + $0x498] sm:$0xff]
    %v222 = vld [vmem:[#allocation5 + $0x4a0] sm:$0xff]
    %v223 = vld [vmem:[#allocation5 + $0x4a8] sm:$0xff]
    %v224 = vld [vmem:[#allocation5 + $0x4b0] sm:$0xff]
    %v225 = vld [vmem:[#allocation5 + $0x4b8] sm:$0xff]
    %v226 = vld [vmem:[#allocation5 + $0x4c0] sm:$0xff]
    %v227 = vld [vmem:[#allocation5 + $0x4c8] sm:$0xff]
    %v228 = vld [vmem:[#allocation5 + $0x4d0] sm:$0xff]
    %v229 = vld [vmem:[#allocation5 + $0x4d8] sm:$0xff]
    %v230 = vld [vmem:[#allocation5 + $0x4e0] sm:$0xff]
    %v231 = vld [vmem:[#allocation5 + $0x4e8] sm:$0xff]
    %v232 = vld [vmem:[#allocation5 + $0x4f0] sm:$0xff]
    %v233 = vld [vmem:[#allocation5 + $0x4f8] sm:$0xff]
    %v234 = vld [vmem:[#allocation5 + $0x500] sm:$0xff]
    %v235 = vld [vmem:[#allocation5 + $0x508] sm:$0xff]
    %v236 = vld [vmem:[#allocation5 + $0x510] sm:$0xff]
    %v237 = vld [vmem:[#allocation5 + $0x518] sm:$0xff]
    %v238 = vld [vmem:[#allocation5 + $0x520] sm:$0xff]
    %v239 = vld [vmem:[#allocation5 + $0x528] sm:$0xff]
    %v240 = vld [vmem:[#allocation5 + $0x530] sm:$0xff]
    %v241 = vld [vmem:[#allocation5 + $0x538] sm:$0xff]
    %v242 = vld [vmem:[#allocation5 + $0x540] sm:$0xff]
    %v243 = vld [vmem:[#allocation5 + $0x548] sm:$0xff]
    %v244 = vld [vmem:[#allocation5 + $0x550] sm:$0xff]
    %v245 = vld [vmem:[#allocation5 + $0x558] sm:$0xff]
    %v246 = vld [vmem:[#allocation5 + $0x560] sm:$0xff]
    %v247 = vld [vmem:[#allocation5 + $0x568] sm:$0xff]
    %v248 = vld [vmem:[#allocation5 + $0x570] sm:$0xff]
    %v249 = vld [vmem:[#allocation5 + $0x578] sm:$0xff]
    %v250 = vld [vmem:[#allocation5 + $0x580] sm:$0xff]
    %v251 = vld [vmem:[#allocation5 + $0x588] sm:$0xff]
    %v252 = vld [vmem:[#allocation5 + $0x590] sm:$0xff]
    %v253 = vld [vmem:[#allocation5 + $0x598] sm:$0xff]
    %v254 = vld [vmem:[#allocation5 + $0x5a0] sm:$0xff]
    %v255 = vld [vmem:[#allocation5 + $0x5a8] sm:$0xff]
    %v256 = vld [vmem:[#allocation5 + $0x5b0] sm:$0xff]
    %v257 = vld [vmem:[#allocation5 + $0x5b8] sm:$0xff]
    %v258 = vld [vmem:[#allocation5 + $0x5c0] sm:$0xff]
    %v259 = vld [vmem:[#allocation5 + $0x5c8] sm:$0xff]
    %v260 = vld [vmem:[#allocation5 + $0x5d0] sm:$0xff]
    %v261 = vld [vmem:[#allocation5 + $0x5d8] sm:$0xff]
    %v262 = vld [vmem:[#allocation5 + $0x5e0] sm:$0xff]
    %v263 = vld [vmem:[#allocation5 + $0x5e8] sm:$0xff]
    %v264 = vld [vmem:[#allocation5 + $0x5f0] sm:$0xff]
    %v265 = vld [vmem:[#allocation5 + $0x5f8] sm:$0xff]
    %v266 = vld [vmem:[#allocation5 + $0x600] sm:$0xff]
    %v267 = vld [vmem:[#allocation5 + $0x608] sm:$0xff]
    %v268 = vld [vmem:[#allocation5 + $0x610] sm:$0xff]
    %v269 = vld [vmem:[#allocation5 + $0x618] sm:$0xff]
    %v270 = vld [vmem:[#allocation5 + $0x620] sm:$0xff]
    %v271 = vld [vmem:[#allocation5 + $0x628] sm:$0xff]
    %v272 = vld [vmem:[#allocation5 + $0x630] sm:$0xff]
    %v273 = vld [vmem:[#allocation5 + $0x638] sm:$0xff]
    %v274 = vld [vmem:[#allocation5 + $0x640] sm:$0xff]
    %v275 = vld [vmem:[#allocation5 + $0x648] sm:$0xff]
    %v276 = vld [vmem:[#allocation5 + $0x650] sm:$0xff]
    %v277 = vld [vmem:[#allocation5 + $0x658] sm:$0xff]
    %v278 = vld [vmem:[#allocation5 + $0x660] sm:$0xff]
    %v279 = vld [vmem:[#allocation5 + $0x668] sm:$0xff]
    %v280 = vld [vmem:[#allocation5 + $0x670] sm:$0xff]
    %v281 = vld [vmem:[#allocation5 + $0x678] sm:$0xff]
    %v282 = vld [vmem:[#allocation5 + $0x680] sm:$0xff]
    %v283 = vld [vmem:[#allocation5 + $0x688] sm:$0xff]
    %v284 = vld [vmem:[#allocation5 + $0x690] sm:$0xff]
    %v285 = vld [vmem:[#allocation5 + $0x698] sm:$0xff]
    %v286 = vld [vmem:[#allocation5 + $0x6a0] sm:$0xff]
    %v287 = vld [vmem:[#allocation5 + $0x6a8] sm:$0xff]
    %v288 = vld [vmem:[#allocation5 + $0x6b0] sm:$0xff]
    %v289 = vld [vmem:[#allocation5 + $0x6b8] sm:$0xff]
    %v290 = vld [vmem:[#allocation5 + $0x6c0] sm:$0xff]
    %v291 = vld [vmem:[#allocation5 + $0x6c8] sm:$0xff]
    %v292 = vld [vmem:[#allocation5 + $0x6d0] sm:$0xff]
    %v293 = vld [vmem:[#allocation5 + $0x6d8] sm:$0xff]
    %v294 = vld [vmem:[#allocation5 + $0x6e0] sm:$0xff]
    %v295 = vld [vmem:[#allocation5 + $0x6e8] sm:$0xff]
    %v296 = vld [vmem:[#allocation5 + $0x6f0] sm:$0xff]
    %v297 = vld [vmem:[#allocation5 + $0x6f8] sm:$0xff]
    %v298 = vld [vmem:[#allocation5 + $0x700] sm:$0xff]
    %v299 = vld [vmem:[#allocation5 + $0x708] sm:$0xff]
    %v300 = vld [vmem:[#allocation5 + $0x710] sm:$0xff]
    %v301 = vld [vmem:[#allocation5 + $0x718] sm:$0xff]
    %v302 = vld [vmem:[#allocation5 + $0x720] sm:$0xff]
    %v303 = vld [vmem:[#allocation5 + $0x728] sm:$0xff]
    %v304 = vld [vmem:[#allocation5 + $0x730] sm:$0xff]
    %v305 = vld [vmem:[#allocation5 + $0x738] sm:$0xff]
    %v306 = vld [vmem:[#allocation5 + $0x740] sm:$0xff]
    %v307 = vld [vmem:[#allocation5 + $0x748] sm:$0xff]
    %v308 = vld [vmem:[#allocation5 + $0x750] sm:$0xff]
    %v309 = vld [vmem:[#allocation5 + $0x758] sm:$0xff]
    %v310 = vld [vmem:[#allocation5 + $0x760] sm:$0xff]
    %v311 = vld [vmem:[#allocation5 + $0x768] sm:$0xff]
    %v312 = vld [vmem:[#allocation5 + $0x770] sm:$0xff]
    %v313 = vld [vmem:[#allocation5 + $0x778] sm:$0xff]
    %v314 = vld [vmem:[#allocation5 + $0x780] sm:$0xff]
    %v315 = vld [vmem:[#allocation5 + $0x788] sm:$0xff]
    %v316 = vld [vmem:[#allocation5 + $0x790] sm:$0xff]
    %v317 = vld [vmem:[#allocation5 + $0x798] sm:$0xff]
    %v318 = vld [vmem:[#allocation5 + $0x7a0] sm:$0xff]
    %v319 = vld [vmem:[#allocation5 + $0x7a8] sm:$0xff]
    %v320 = vld [vmem:[#allocation5 + $0x7b0] sm:$0xff]
    %v321 = vld [vmem:[#allocation5 + $0x7b8] sm:$0xff]
    %v322 = vld [vmem:[#allocation5 + $0x7c0] sm:$0xff]
    %v323 = vld [vmem:[#allocation5 + $0x7c8] sm:$0xff]
    %v324 = vld [vmem:[#allocation5 + $0x7d0] sm:$0xff]
    %v325 = vld [vmem:[#allocation5 + $0x7d8] sm:$0xff]
    %v326 = vld [vmem:[#allocation5 + $0x7e0] sm:$0xff]
    %v327 = vld [vmem:[#allocation5 + $0x7e8] sm:$0xff]
    %v328 = vld [vmem:[#allocation5 + $0x7f0] sm:$0xff]
    %v329 = vld [vmem:[#allocation5 + $0x7f8] sm:$0xff]
    %v330 = vld [vmem:[#allocation7] sm:$0xf]
    %v332 = vlaneseq
    %v333 = vshrl.u32 %v332, 7
    %v334 = vsub.s32 0, %v333
    %v335 = vrot.slane %v330, %v334
    %v336 = vlaneseq
    %v337 = vshrl.u32 %v336, 7
    %v338 = vsub.s32 1, %v337
    %v339 = vrot.slane %v330, %v338
    %v340 = vlaneseq
    %v341 = vshrl.u32 %v340, 7
    %v342 = vsub.s32 2, %v341
    %v343 = vrot.slane %v330, %v342
    %v344 = vlaneseq
    %v345 = vshrl.u32 %v344, 7
    %v346 = vsub.s32 3, %v345
    %v347 = vrot.slane %v330, %v346
    %v353 = vcombine.high %v73, %v73
    %v355 = vunpack.c.l.s4 1966171168
    %v356 = vunpack.c.0.s8 %v355
    %v357 = vlaneseq
    %v358 = vshrl.u32 %v357, 7
    %v359 = vsub.s32 %v356, %v358
    %v360 = vrot.slane %v73, %v359
    %v362 = vunpack.c.l.s4 1966171168
    %v363 = vunpack.c.0.s8 %v362
    %v364 = vlaneseq
    %v365 = vshrl.u32 %v364, 7
    %v366 = vsub.s32 %v363, %v365
    %v367 = vrot.slane %v353, %v366
    %v368 = vcombine.high %v360, %v360
    %v369 = vcombine.high %v367, %v367
    %v371 = vunpack.c.l.s4 1966171168
    %v372 = vunpack.c.0.s8 %v371
    %v373 = vlaneseq
    %v374 = vshrl.u32 %v373, 7
    %v375 = vsub.s32 %v372, %v374
    %v376 = vrot.slane %v360, %v375
    %v378 = vunpack.c.l.s4 1966171168
    %v379 = vunpack.c.0.s8 %v378
    %v380 = vlaneseq
    %v381 = vshrl.u32 %v380, 7
    %v382 = vsub.s32 %v379, %v381
    %v383 = vrot.slane %v367, %v382
    %v385 = vunpack.c.l.s4 1966171168
    %v386 = vunpack.c.0.s8 %v385
    %v387 = vlaneseq
    %v388 = vshrl.u32 %v387, 7
    %v389 = vsub.s32 %v386, %v388
    %v390 = vrot.slane %v368, %v389
    %v392 = vunpack.c.l.s4 1966171168
    %v393 = vunpack.c.0.s8 %v392
    %v394 = vlaneseq
    %v395 = vshrl.u32 %v394, 7
    %v396 = vsub.s32 %v393, %v395
    %v397 = vrot.slane %v369, %v396
    %v398 = vcombine.high %v376, %v376
    %v399 = vcombine.high %v383, %v383
    %v400 = vcombine.high %v390, %v390
    %v401 = vcombine.high %v397, %v397
    %v666 = vunpack.c.l.b16 %v74
    %v667 = vunpack.c.h.b16 %v74
    %v668 = vunpack.c.l.b16 %v75
    %v669 = vunpack.c.h.b16 %v75
    %v670 = vunpack.c.l.b16 %v76
    %v671 = vunpack.c.h.b16 %v76
    %v672 = vunpack.c.l.b16 %v77
    %v673 = vunpack.c.h.b16 %v77
    %v674 = vunpack.c.l.b16 %v78
    %v675 = vunpack.c.h.b16 %v78
    %v676 = vunpack.c.l.b16 %v79
    %v677 = vunpack.c.h.b16 %v79
    %v678 = vunpack.c.l.b16 %v80
    %v679 = vunpack.c.h.b16 %v80
    %v680 = vunpack.c.l.b16 %v81
    %v681 = vunpack.c.h.b16 %v81
    %v682 = vunpack.c.l.b16 %v82
    %v683 = vunpack.c.h.b16 %v82
    %v684 = vunpack.c.l.b16 %v83
    %v685 = vunpack.c.h.b16 %v83
    %v686 = vunpack.c.l.b16 %v84
    %v687 = vunpack.c.h.b16 %v84
    %v688 = vunpack.c.l.b16 %v85
    %v689 = vunpack.c.h.b16 %v85
    %v690 = vunpack.c.l.b16 %v86
    %v691 = vunpack.c.h.b16 %v86
    %v692 = vunpack.c.l.b16 %v87
    %v693 = vunpack.c.h.b16 %v87
    %v694 = vunpack.c.l.b16 %v88
    %v695 = vunpack.c.h.b16 %v88
    %v696 = vunpack.c.l.b16 %v89
    %v697 = vunpack.c.h.b16 %v89
    %v698 = vunpack.c.l.b16 %v90
    %v699 = vunpack.c.h.b16 %v90
    %v700 = vunpack.c.l.b16 %v91
    %v701 = vunpack.c.h.b16 %v91
    %v702 = vunpack.c.l.b16 %v92
    %v703 = vunpack.c.h.b16 %v92
    %v704 = vunpack.c.l.b16 %v93
    %v705 = vunpack.c.h.b16 %v93
    %v706 = vunpack.c.l.b16 %v94
    %v707 = vunpack.c.h.b16 %v94
    %v708 = vunpack.c.l.b16 %v95
    %v709 = vunpack.c.h.b16 %v95
    %v710 = vunpack.c.l.b16 %v96
    %v711 = vunpack.c.h.b16 %v96
    %v712 = vunpack.c.l.b16 %v97
    %v713 = vunpack.c.h.b16 %v97
    %v714 = vunpack.c.l.b16 %v98
    %v715 = vunpack.c.h.b16 %v98
    %v716 = vunpack.c.l.b16 %v99
    %v717 = vunpack.c.h.b16 %v99
    %v718 = vunpack.c.l.b16 %v100
    %v719 = vunpack.c.h.b16 %v100
    %v720 = vunpack.c.l.b16 %v101
    %v721 = vunpack.c.h.b16 %v101
    %v722 = vunpack.c.l.b16 %v102
    %v723 = vunpack.c.h.b16 %v102
    %v724 = vunpack.c.l.b16 %v103
    %v725 = vunpack.c.h.b16 %v103
    %v726 = vunpack.c.l.b16 %v104
    %v727 = vunpack.c.h.b16 %v104
    %v728 = vunpack.c.l.b16 %v105
    %v729 = vunpack.c.h.b16 %v105
    %v730 = vunpack.c.l.b16 %v106
    %v731 = vunpack.c.h.b16 %v106
    %v732 = vunpack.c.l.b16 %v107
    %v733 = vunpack.c.h.b16 %v107
    %v734 = vunpack.c.l.b16 %v108
    %v735 = vunpack.c.h.b16 %v108
    %v736 = vunpack.c.l.b16 %v109
    %v737 = vunpack.c.h.b16 %v109
    %v738 = vunpack.c.l.b16 %v110
    %v739 = vunpack.c.h.b16 %v110
    %v740 = vunpack.c.l.b16 %v111
    %v741 = vunpack.c.h.b16 %v111
    %v742 = vunpack.c.l.b16 %v112
    %v743 = vunpack.c.h.b16 %v112
    %v744 = vunpack.c.l.b16 %v113
    %v745 = vunpack.c.h.b16 %v113
    %v746 = vunpack.c.l.b16 %v114
    %v747 = vunpack.c.h.b16 %v114
    %v748 = vunpack.c.l.b16 %v115
    %v749 = vunpack.c.h.b16 %v115
    %v750 = vunpack.c.l.b16 %v116
    %v751 = vunpack.c.h.b16 %v116
    %v752 = vunpack.c.l.b16 %v117
    %v753 = vunpack.c.h.b16 %v117
    %v754 = vunpack.c.l.b16 %v118
    %v755 = vunpack.c.h.b16 %v118
    %v756 = vunpack.c.l.b16 %v119
    %v757 = vunpack.c.h.b16 %v119
    %v758 = vunpack.c.l.b16 %v120
    %v759 = vunpack.c.h.b16 %v120
    %v760 = vunpack.c.l.b16 %v121
    %v761 = vunpack.c.h.b16 %v121
    %v762 = vunpack.c.l.b16 %v122
    %v763 = vunpack.c.h.b16 %v122
    %v764 = vunpack.c.l.b16 %v123
    %v765 = vunpack.c.h.b16 %v123
    %v766 = vunpack.c.l.b16 %v124
    %v767 = vunpack.c.h.b16 %v124
    %v768 = vunpack.c.l.b16 %v125
    %v769 = vunpack.c.h.b16 %v125
    %v770 = vunpack.c.l.b16 %v126
    %v771 = vunpack.c.h.b16 %v126
    %v772 = vunpack.c.l.b16 %v127
    %v773 = vunpack.c.h.b16 %v127
    %v774 = vunpack.c.l.b16 %v128
    %v775 = vunpack.c.h.b16 %v128
    %v776 = vunpack.c.l.b16 %v129
    %v777 = vunpack.c.h.b16 %v129
    %v778 = vunpack.c.l.b16 %v130
    %v779 = vunpack.c.h.b16 %v130
    %v780 = vunpack.c.l.b16 %v131
    %v781 = vunpack.c.h.b16 %v131
    %v782 = vunpack.c.l.b16 %v132
    %v783 = vunpack.c.h.b16 %v132
    %v784 = vunpack.c.l.b16 %v133
    %v785 = vunpack.c.h.b16 %v133
    %v786 = vunpack.c.l.b16 %v134
    %v787 = vunpack.c.h.b16 %v134
    %v788 = vunpack.c.l.b16 %v135
    %v789 = vunpack.c.h.b16 %v135
    %v790 = vunpack.c.l.b16 %v136
    %v791 = vunpack.c.h.b16 %v136
    %v792 = vunpack.c.l.b16 %v137
    %v793 = vunpack.c.h.b16 %v137
    %v794 = vunpack.c.l.b16 %v138
    %v795 = vunpack.c.h.b16 %v138
    %v796 = vunpack.c.l.b16 %v139
    %v797 = vunpack.c.h.b16 %v139
    %v798 = vunpack.c.l.b16 %v140
    %v799 = vunpack.c.h.b16 %v140
    %v800 = vunpack.c.l.b16 %v141
    %v801 = vunpack.c.h.b16 %v141
    %v802 = vunpack.c.l.b16 %v142
    %v803 = vunpack.c.h.b16 %v142
    %v804 = vunpack.c.l.b16 %v143
    %v805 = vunpack.c.h.b16 %v143
    %v806 = vunpack.c.l.b16 %v144
    %v807 = vunpack.c.h.b16 %v144
    %v808 = vunpack.c.l.b16 %v145
    %v809 = vunpack.c.h.b16 %v145
    %v810 = vunpack.c.l.b16 %v146
    %v811 = vunpack.c.h.b16 %v146
    %v812 = vunpack.c.l.b16 %v147
    %v813 = vunpack.c.h.b16 %v147
    %v814 = vunpack.c.l.b16 %v148
    %v815 = vunpack.c.h.b16 %v148
    %v816 = vunpack.c.l.b16 %v149
    %v817 = vunpack.c.h.b16 %v149
    %v818 = vunpack.c.l.b16 %v150
    %v819 = vunpack.c.h.b16 %v150
    %v820 = vunpack.c.l.b16 %v151
    %v821 = vunpack.c.h.b16 %v151
    %v822 = vunpack.c.l.b16 %v152
    %v823 = vunpack.c.h.b16 %v152
    %v824 = vunpack.c.l.b16 %v153
    %v825 = vunpack.c.h.b16 %v153
    %v826 = vunpack.c.l.b16 %v154
    %v827 = vunpack.c.h.b16 %v154
    %v828 = vunpack.c.l.b16 %v155
    %v829 = vunpack.c.h.b16 %v155
    %v830 = vunpack.c.l.b16 %v156
    %v831 = vunpack.c.h.b16 %v156
    %v832 = vunpack.c.l.b16 %v157
    %v833 = vunpack.c.h.b16 %v157
    %v834 = vunpack.c.l.b16 %v158
    %v835 = vunpack.c.h.b16 %v158
    %v836 = vunpack.c.l.b16 %v159
    %v837 = vunpack.c.h.b16 %v159
    %v838 = vunpack.c.l.b16 %v160
    %v839 = vunpack.c.h.b16 %v160
    %v840 = vunpack.c.l.b16 %v161
    %v841 = vunpack.c.h.b16 %v161
    %v842 = vunpack.c.l.b16 %v162
    %v843 = vunpack.c.h.b16 %v162
    %v844 = vunpack.c.l.b16 %v163
    %v845 = vunpack.c.h.b16 %v163
    %v846 = vunpack.c.l.b16 %v164
    %v847 = vunpack.c.h.b16 %v164
    %v848 = vunpack.c.l.b16 %v165
    %v849 = vunpack.c.h.b16 %v165
    %v850 = vunpack.c.l.b16 %v166
    %v851 = vunpack.c.h.b16 %v166
    %v852 = vunpack.c.l.b16 %v167
    %v853 = vunpack.c.h.b16 %v167
    %v854 = vunpack.c.l.b16 %v168
    %v855 = vunpack.c.h.b16 %v168
    %v856 = vunpack.c.l.b16 %v169
    %v857 = vunpack.c.h.b16 %v169
    %v858 = vunpack.c.l.b16 %v170
    %v859 = vunpack.c.h.b16 %v170
    %v860 = vunpack.c.l.b16 %v171
    %v861 = vunpack.c.h.b16 %v171
    %v862 = vunpack.c.l.b16 %v172
    %v863 = vunpack.c.h.b16 %v172
    %v864 = vunpack.c.l.b16 %v173
    %v865 = vunpack.c.h.b16 %v173
    %v866 = vunpack.c.l.b16 %v174
    %v867 = vunpack.c.h.b16 %v174
    %v868 = vunpack.c.l.b16 %v175
    %v869 = vunpack.c.h.b16 %v175
    %v870 = vunpack.c.l.b16 %v176
    %v871 = vunpack.c.h.b16 %v176
    %v872 = vunpack.c.l.b16 %v177
    %v873 = vunpack.c.h.b16 %v177
    %v874 = vunpack.c.l.b16 %v178
    %v875 = vunpack.c.h.b16 %v178
    %v876 = vunpack.c.l.b16 %v179
    %v877 = vunpack.c.h.b16 %v179
    %v878 = vunpack.c.l.b16 %v180
    %v879 = vunpack.c.h.b16 %v180
    %v880 = vunpack.c.l.b16 %v181
    %v881 = vunpack.c.h.b16 %v181
    %v882 = vunpack.c.l.b16 %v182
    %v883 = vunpack.c.h.b16 %v182
    %v884 = vunpack.c.l.b16 %v183
    %v885 = vunpack.c.h.b16 %v183
    %v886 = vunpack.c.l.b16 %v184
    %v887 = vunpack.c.h.b16 %v184
    %v888 = vunpack.c.l.b16 %v185
    %v889 = vunpack.c.h.b16 %v185
    %v890 = vunpack.c.l.b16 %v186
    %v891 = vunpack.c.h.b16 %v186
    %v892 = vunpack.c.l.b16 %v187
    %v893 = vunpack.c.h.b16 %v187
    %v894 = vunpack.c.l.b16 %v188
    %v895 = vunpack.c.h.b16 %v188
    %v896 = vunpack.c.l.b16 %v189
    %v897 = vunpack.c.h.b16 %v189
    %v898 = vunpack.c.l.b16 %v190
    %v899 = vunpack.c.h.b16 %v190
    %v900 = vunpack.c.l.b16 %v191
    %v901 = vunpack.c.h.b16 %v191
    %v902 = vunpack.c.l.b16 %v192
    %v903 = vunpack.c.h.b16 %v192
    %v904 = vunpack.c.l.b16 %v193
    %v905 = vunpack.c.h.b16 %v193
    %v906 = vunpack.c.l.b16 %v194
    %v907 = vunpack.c.h.b16 %v194
    %v908 = vunpack.c.l.b16 %v195
    %v909 = vunpack.c.h.b16 %v195
    %v910 = vunpack.c.l.b16 %v196
    %v911 = vunpack.c.h.b16 %v196
    %v912 = vunpack.c.l.b16 %v197
    %v913 = vunpack.c.h.b16 %v197
    %v914 = vunpack.c.l.b16 %v198
    %v915 = vunpack.c.h.b16 %v198
    %v916 = vunpack.c.l.b16 %v199
    %v917 = vunpack.c.h.b16 %v199
    %v918 = vunpack.c.l.b16 %v200
    %v919 = vunpack.c.h.b16 %v200
    %v920 = vunpack.c.l.b16 %v201
    %v921 = vunpack.c.h.b16 %v201
    %v922 = vunpack.c.l.b16 %v202
    %v923 = vunpack.c.h.b16 %v202
    %v924 = vunpack.c.l.b16 %v203
    %v925 = vunpack.c.h.b16 %v203
    %v926 = vunpack.c.l.b16 %v204
    %v927 = vunpack.c.h.b16 %v204
    %v928 = vunpack.c.l.b16 %v205
    %v929 = vunpack.c.h.b16 %v205
    %v930 = vunpack.c.l.b16 %v206
    %v931 = vunpack.c.h.b16 %v206
    %v932 = vunpack.c.l.b16 %v207
    %v933 = vunpack.c.h.b16 %v207
    %v934 = vunpack.c.l.b16 %v208
    %v935 = vunpack.c.h.b16 %v208
    %v936 = vunpack.c.l.b16 %v209
    %v937 = vunpack.c.h.b16 %v209
    %v938 = vunpack.c.l.b16 %v210
    %v939 = vunpack.c.h.b16 %v210
    %v940 = vunpack.c.l.b16 %v211
    %v941 = vunpack.c.h.b16 %v211
    %v942 = vunpack.c.l.b16 %v212
    %v943 = vunpack.c.h.b16 %v212
    %v944 = vunpack.c.l.b16 %v213
    %v945 = vunpack.c.h.b16 %v213
    %v946 = vunpack.c.l.b16 %v214
    %v947 = vunpack.c.h.b16 %v214
    %v948 = vunpack.c.l.b16 %v215
    %v949 = vunpack.c.h.b16 %v215
    %v950 = vunpack.c.l.b16 %v216
    %v951 = vunpack.c.h.b16 %v216
    %v952 = vunpack.c.l.b16 %v217
    %v953 = vunpack.c.h.b16 %v217
    %v954 = vunpack.c.l.b16 %v218
    %v955 = vunpack.c.h.b16 %v218
    %v956 = vunpack.c.l.b16 %v219
    %v957 = vunpack.c.h.b16 %v219
    %v958 = vunpack.c.l.b16 %v220
    %v959 = vunpack.c.h.b16 %v220
    %v960 = vunpack.c.l.b16 %v221
    %v961 = vunpack.c.h.b16 %v221
    %v962 = vunpack.c.l.b16 %v222
    %v963 = vunpack.c.h.b16 %v222
    %v964 = vunpack.c.l.b16 %v223
    %v965 = vunpack.c.h.b16 %v223
    %v966 = vunpack.c.l.b16 %v224
    %v967 = vunpack.c.h.b16 %v224
    %v968 = vunpack.c.l.b16 %v225
    %v969 = vunpack.c.h.b16 %v225
    %v970 = vunpack.c.l.b16 %v226
    %v971 = vunpack.c.h.b16 %v226
    %v972 = vunpack.c.l.b16 %v227
    %v973 = vunpack.c.h.b16 %v227
    %v974 = vunpack.c.l.b16 %v228
    %v975 = vunpack.c.h.b16 %v228
    %v976 = vunpack.c.l.b16 %v229
    %v977 = vunpack.c.h.b16 %v229
    %v978 = vunpack.c.l.b16 %v230
    %v979 = vunpack.c.h.b16 %v230
    %v980 = vunpack.c.l.b16 %v231
    %v981 = vunpack.c.h.b16 %v231
    %v982 = vunpack.c.l.b16 %v232
    %v983 = vunpack.c.h.b16 %v232
    %v984 = vunpack.c.l.b16 %v233
    %v985 = vunpack.c.h.b16 %v233
    %v986 = vunpack.c.l.b16 %v234
    %v987 = vunpack.c.h.b16 %v234
    %v988 = vunpack.c.l.b16 %v235
    %v989 = vunpack.c.h.b16 %v235
    %v990 = vunpack.c.l.b16 %v236
    %v991 = vunpack.c.h.b16 %v236
    %v992 = vunpack.c.l.b16 %v237
    %v993 = vunpack.c.h.b16 %v237
    %v994 = vunpack.c.l.b16 %v238
    %v995 = vunpack.c.h.b16 %v238
    %v996 = vunpack.c.l.b16 %v239
    %v997 = vunpack.c.h.b16 %v239
    %v998 = vunpack.c.l.b16 %v240
    %v999 = vunpack.c.h.b16 %v240
    %v1000 = vunpack.c.l.b16 %v241
    %v1001 = vunpack.c.h.b16 %v241
    %v1002 = vunpack.c.l.b16 %v242
    %v1003 = vunpack.c.h.b16 %v242
    %v1004 = vunpack.c.l.b16 %v243
    %v1005 = vunpack.c.h.b16 %v243
    %v1006 = vunpack.c.l.b16 %v244
    %v1007 = vunpack.c.h.b16 %v244
    %v1008 = vunpack.c.l.b16 %v245
    %v1009 = vunpack.c.h.b16 %v245
    %v1010 = vunpack.c.l.b16 %v246
    %v1011 = vunpack.c.h.b16 %v246
    %v1012 = vunpack.c.l.b16 %v247
    %v1013 = vunpack.c.h.b16 %v247
    %v1014 = vunpack.c.l.b16 %v248
    %v1015 = vunpack.c.h.b16 %v248
    %v1016 = vunpack.c.l.b16 %v249
    %v1017 = vunpack.c.h.b16 %v249
    %v1018 = vunpack.c.l.b16 %v250
    %v1019 = vunpack.c.h.b16 %v250
    %v1020 = vunpack.c.l.b16 %v251
    %v1021 = vunpack.c.h.b16 %v251
    %v1022 = vunpack.c.l.b16 %v252
    %v1023 = vunpack.c.h.b16 %v252
    %v1024 = vunpack.c.l.b16 %v253
    %v1025 = vunpack.c.h.b16 %v253
    %v1026 = vunpack.c.l.b16 %v254
    %v1027 = vunpack.c.h.b16 %v254
    %v1028 = vunpack.c.l.b16 %v255
    %v1029 = vunpack.c.h.b16 %v255
    %v1030 = vunpack.c.l.b16 %v256
    %v1031 = vunpack.c.h.b16 %v256
    %v1032 = vunpack.c.l.b16 %v257
    %v1033 = vunpack.c.h.b16 %v257
    %v1034 = vunpack.c.l.b16 %v258
    %v1035 = vunpack.c.h.b16 %v258
    %v1036 = vunpack.c.l.b16 %v259
    %v1037 = vunpack.c.h.b16 %v259
    %v1038 = vunpack.c.l.b16 %v260
    %v1039 = vunpack.c.h.b16 %v260
    %v1040 = vunpack.c.l.b16 %v261
    %v1041 = vunpack.c.h.b16 %v261
    %v1042 = vunpack.c.l.b16 %v262
    %v1043 = vunpack.c.h.b16 %v262
    %v1044 = vunpack.c.l.b16 %v263
    %v1045 = vunpack.c.h.b16 %v263
    %v1046 = vunpack.c.l.b16 %v264
    %v1047 = vunpack.c.h.b16 %v264
    %v1048 = vunpack.c.l.b16 %v265
    %v1049 = vunpack.c.h.b16 %v265
    %v1050 = vunpack.c.l.b16 %v266
    %v1051 = vunpack.c.h.b16 %v266
    %v1052 = vunpack.c.l.b16 %v267
    %v1053 = vunpack.c.h.b16 %v267
    %v1054 = vunpack.c.l.b16 %v268
    %v1055 = vunpack.c.h.b16 %v268
    %v1056 = vunpack.c.l.b16 %v269
    %v1057 = vunpack.c.h.b16 %v269
    %v1058 = vunpack.c.l.b16 %v270
    %v1059 = vunpack.c.h.b16 %v270
    %v1060 = vunpack.c.l.b16 %v271
    %v1061 = vunpack.c.h.b16 %v271
    %v1062 = vunpack.c.l.b16 %v272
    %v1063 = vunpack.c.h.b16 %v272
    %v1064 = vunpack.c.l.b16 %v273
    %v1065 = vunpack.c.h.b16 %v273
    %v1066 = vunpack.c.l.b16 %v274
    %v1067 = vunpack.c.h.b16 %v274
    %v1068 = vunpack.c.l.b16 %v275
    %v1069 = vunpack.c.h.b16 %v275
    %v1070 = vunpack.c.l.b16 %v276
    %v1071 = vunpack.c.h.b16 %v276
    %v1072 = vunpack.c.l.b16 %v277
    %v1073 = vunpack.c.h.b16 %v277
    %v1074 = vunpack.c.l.b16 %v278
    %v1075 = vunpack.c.h.b16 %v278
    %v1076 = vunpack.c.l.b16 %v279
    %v1077 = vunpack.c.h.b16 %v279
    %v1078 = vunpack.c.l.b16 %v280
    %v1079 = vunpack.c.h.b16 %v280
    %v1080 = vunpack.c.l.b16 %v281
    %v1081 = vunpack.c.h.b16 %v281
    %v1082 = vunpack.c.l.b16 %v282
    %v1083 = vunpack.c.h.b16 %v282
    %v1084 = vunpack.c.l.b16 %v283
    %v1085 = vunpack.c.h.b16 %v283
    %v1086 = vunpack.c.l.b16 %v284
    %v1087 = vunpack.c.h.b16 %v284
    %v1088 = vunpack.c.l.b16 %v285
    %v1089 = vunpack.c.h.b16 %v285
    %v1090 = vunpack.c.l.b16 %v286
    %v1091 = vunpack.c.h.b16 %v286
    %v1092 = vunpack.c.l.b16 %v287
    %v1093 = vunpack.c.h.b16 %v287
    %v1094 = vunpack.c.l.b16 %v288
    %v1095 = vunpack.c.h.b16 %v288
    %v1096 = vunpack.c.l.b16 %v289
    %v1097 = vunpack.c.h.b16 %v289
    %v1098 = vunpack.c.l.b16 %v290
    %v1099 = vunpack.c.h.b16 %v290
    %v1100 = vunpack.c.l.b16 %v291
    %v1101 = vunpack.c.h.b16 %v291
    %v1102 = vunpack.c.l.b16 %v292
    %v1103 = vunpack.c.h.b16 %v292
    %v1104 = vunpack.c.l.b16 %v293
    %v1105 = vunpack.c.h.b16 %v293
    %v1106 = vunpack.c.l.b16 %v294
    %v1107 = vunpack.c.h.b16 %v294
    %v1108 = vunpack.c.l.b16 %v295
    %v1109 = vunpack.c.h.b16 %v295
    %v1110 = vunpack.c.l.b16 %v296
    %v1111 = vunpack.c.h.b16 %v296
    %v1112 = vunpack.c.l.b16 %v297
    %v1113 = vunpack.c.h.b16 %v297
    %v1114 = vunpack.c.l.b16 %v298
    %v1115 = vunpack.c.h.b16 %v298
    %v1116 = vunpack.c.l.b16 %v299
    %v1117 = vunpack.c.h.b16 %v299
    %v1118 = vunpack.c.l.b16 %v300
    %v1119 = vunpack.c.h.b16 %v300
    %v1120 = vunpack.c.l.b16 %v301
    %v1121 = vunpack.c.h.b16 %v301
    %v1122 = vunpack.c.l.b16 %v302
    %v1123 = vunpack.c.h.b16 %v302
    %v1124 = vunpack.c.l.b16 %v303
    %v1125 = vunpack.c.h.b16 %v303
    %v1126 = vunpack.c.l.b16 %v304
    %v1127 = vunpack.c.h.b16 %v304
    %v1128 = vunpack.c.l.b16 %v305
    %v1129 = vunpack.c.h.b16 %v305
    %v1130 = vunpack.c.l.b16 %v306
    %v1131 = vunpack.c.h.b16 %v306
    %v1132 = vunpack.c.l.b16 %v307
    %v1133 = vunpack.c.h.b16 %v307
    %v1134 = vunpack.c.l.b16 %v308
    %v1135 = vunpack.c.h.b16 %v308
    %v1136 = vunpack.c.l.b16 %v309
    %v1137 = vunpack.c.h.b16 %v309
    %v1138 = vunpack.c.l.b16 %v310
    %v1139 = vunpack.c.h.b16 %v310
    %v1140 = vunpack.c.l.b16 %v311
    %v1141 = vunpack.c.h.b16 %v311
    %v1142 = vunpack.c.l.b16 %v312
    %v1143 = vunpack.c.h.b16 %v312
    %v1144 = vunpack.c.l.b16 %v313
    %v1145 = vunpack.c.h.b16 %v313
    %v1146 = vunpack.c.l.b16 %v314
    %v1147 = vunpack.c.h.b16 %v314
    %v1148 = vunpack.c.l.b16 %v315
    %v1149 = vunpack.c.h.b16 %v315
    %v1150 = vunpack.c.l.b16 %v316
    %v1151 = vunpack.c.h.b16 %v316
    %v1152 = vunpack.c.l.b16 %v317
    %v1153 = vunpack.c.h.b16 %v317
    %v1154 = vunpack.c.l.b16 %v318
    %v1155 = vunpack.c.h.b16 %v318
    %v1156 = vunpack.c.l.b16 %v319
    %v1157 = vunpack.c.h.b16 %v319
    %v1158 = vunpack.c.l.b16 %v320
    %v1159 = vunpack.c.h.b16 %v320
    %v1160 = vunpack.c.l.b16 %v321
    %v1161 = vunpack.c.h.b16 %v321
    %v1162 = vunpack.c.l.b16 %v322
    %v1163 = vunpack.c.h.b16 %v322
    %v1164 = vunpack.c.l.b16 %v323
    %v1165 = vunpack.c.h.b16 %v323
    %v1166 = vunpack.c.l.b16 %v324
    %v1167 = vunpack.c.h.b16 %v324
    %v1168 = vunpack.c.l.b16 %v325
    %v1169 = vunpack.c.h.b16 %v325
    %v1170 = vunpack.c.l.b16 %v326
    %v1171 = vunpack.c.h.b16 %v326
    %v1172 = vunpack.c.l.b16 %v327
    %v1173 = vunpack.c.h.b16 %v327
    %v1174 = vunpack.c.l.b16 %v328
    %v1175 = vunpack.c.h.b16 %v328
    %v1176 = vunpack.c.l.b16 %v329
    %v1177 = vunpack.c.h.b16 %v329
    %v1178 = vpack.c.b16 %v670, %v666
    %v1179 = vpack.c.b16 %v671, %v667
    %v1180 = vpack.c.b16 %v672, %v668
    %v1181 = vpack.c.b16 %v673, %v669
    %v1182 = vpack.c.b16 %v678, %v674
    %v1183 = vpack.c.b16 %v679, %v675
    %v1184 = vpack.c.b16 %v680, %v676
    %v1185 = vpack.c.b16 %v681, %v677
    %v1186 = vpack.c.b16 %v686, %v682
    %v1187 = vpack.c.b16 %v687, %v683
    %v1188 = vpack.c.b16 %v688, %v684
    %v1189 = vpack.c.b16 %v689, %v685
    %v1190 = vpack.c.b16 %v694, %v690
    %v1191 = vpack.c.b16 %v695, %v691
    %v1192 = vpack.c.b16 %v696, %v692
    %v1193 = vpack.c.b16 %v697, %v693
    %v1194 = vpack.c.b16 %v702, %v698
    %v1195 = vpack.c.b16 %v703, %v699
    %v1196 = vpack.c.b16 %v704, %v700
    %v1197 = vpack.c.b16 %v705, %v701
    %v1198 = vpack.c.b16 %v710, %v706
    %v1199 = vpack.c.b16 %v711, %v707
    %v1200 = vpack.c.b16 %v712, %v708
    %v1201 = vpack.c.b16 %v713, %v709
    %v1202 = vpack.c.b16 %v718, %v714
    %v1203 = vpack.c.b16 %v719, %v715
    %v1204 = vpack.c.b16 %v720, %v716
    %v1205 = vpack.c.b16 %v721, %v717
    %v1206 = vpack.c.b16 %v726, %v722
    %v1207 = vpack.c.b16 %v727, %v723
    %v1208 = vpack.c.b16 %v728, %v724
    %v1209 = vpack.c.b16 %v729, %v725
    %v1210 = vpack.c.b16 %v734, %v730
    %v1211 = vpack.c.b16 %v735, %v731
    %v1212 = vpack.c.b16 %v736, %v732
    %v1213 = vpack.c.b16 %v737, %v733
    %v1214 = vpack.c.b16 %v742, %v738
    %v1215 = vpack.c.b16 %v743, %v739
    %v1216 = vpack.c.b16 %v744, %v740
    %v1217 = vpack.c.b16 %v745, %v741
    %v1218 = vpack.c.b16 %v750, %v746
    %v1219 = vpack.c.b16 %v751, %v747
    %v1220 = vpack.c.b16 %v752, %v748
    %v1221 = vpack.c.b16 %v753, %v749
    %v1222 = vpack.c.b16 %v758, %v754
    %v1223 = vpack.c.b16 %v759, %v755
    %v1224 = vpack.c.b16 %v760, %v756
    %v1225 = vpack.c.b16 %v761, %v757
    %v1226 = vpack.c.b16 %v766, %v762
    %v1227 = vpack.c.b16 %v767, %v763
    %v1228 = vpack.c.b16 %v768, %v764
    %v1229 = vpack.c.b16 %v769, %v765
    %v1230 = vpack.c.b16 %v774, %v770
    %v1231 = vpack.c.b16 %v775, %v771
    %v1232 = vpack.c.b16 %v776, %v772
    %v1233 = vpack.c.b16 %v777, %v773
    %v1234 = vpack.c.b16 %v782, %v778
    %v1235 = vpack.c.b16 %v783, %v779
    %v1236 = vpack.c.b16 %v784, %v780
    %v1237 = vpack.c.b16 %v785, %v781
    %v1238 = vpack.c.b16 %v790, %v786
    %v1239 = vpack.c.b16 %v791, %v787
    %v1240 = vpack.c.b16 %v792, %v788
    %v1241 = vpack.c.b16 %v793, %v789
    %v1242 = vpack.c.b16 %v798, %v794
    %v1243 = vpack.c.b16 %v799, %v795
    %v1244 = vpack.c.b16 %v800, %v796
    %v1245 = vpack.c.b16 %v801, %v797
    %v1246 = vpack.c.b16 %v806, %v802
    %v1247 = vpack.c.b16 %v807, %v803
    %v1248 = vpack.c.b16 %v808, %v804
    %v1249 = vpack.c.b16 %v809, %v805
    %v1250 = vpack.c.b16 %v814, %v810
    %v1251 = vpack.c.b16 %v815, %v811
    %v1252 = vpack.c.b16 %v816, %v812
    %v1253 = vpack.c.b16 %v817, %v813
    %v1254 = vpack.c.b16 %v822, %v818
    %v1255 = vpack.c.b16 %v823, %v819
    %v1256 = vpack.c.b16 %v824, %v820
    %v1257 = vpack.c.b16 %v825, %v821
    %v1258 = vpack.c.b16 %v830, %v826
    %v1259 = vpack.c.b16 %v831, %v827
    %v1260 = vpack.c.b16 %v832, %v828
    %v1261 = vpack.c.b16 %v833, %v829
    %v1262 = vpack.c.b16 %v838, %v834
    %v1263 = vpack.c.b16 %v839, %v835
    %v1264 = vpack.c.b16 %v840, %v836
    %v1265 = vpack.c.b16 %v841, %v837
    %v1266 = vpack.c.b16 %v846, %v842
    %v1267 = vpack.c.b16 %v847, %v843
    %v1268 = vpack.c.b16 %v848, %v844
    %v1269 = vpack.c.b16 %v849, %v845
    %v1270 = vpack.c.b16 %v854, %v850
    %v1271 = vpack.c.b16 %v855, %v851
    %v1272 = vpack.c.b16 %v856, %v852
    %v1273 = vpack.c.b16 %v857, %v853
    %v1274 = vpack.c.b16 %v862, %v858
    %v1275 = vpack.c.b16 %v863, %v859
    %v1276 = vpack.c.b16 %v864, %v860
    %v1277 = vpack.c.b16 %v865, %v861
    %v1278 = vpack.c.b16 %v870, %v866
    %v1279 = vpack.c.b16 %v871, %v867
    %v1280 = vpack.c.b16 %v872, %v868
    %v1281 = vpack.c.b16 %v873, %v869
    %v1282 = vpack.c.b16 %v878, %v874
    %v1283 = vpack.c.b16 %v879, %v875
    %v1284 = vpack.c.b16 %v880, %v876
    %v1285 = vpack.c.b16 %v881, %v877
    %v1286 = vpack.c.b16 %v886, %v882
    %v1287 = vpack.c.b16 %v887, %v883
    %v1288 = vpack.c.b16 %v888, %v884
    %v1289 = vpack.c.b16 %v889, %v885
    %v1290 = vpack.c.b16 %v894, %v890
    %v1291 = vpack.c.b16 %v895, %v891
    %v1292 = vpack.c.b16 %v896, %v892
    %v1293 = vpack.c.b16 %v897, %v893
    %v1294 = vpack.c.b16 %v902, %v898
    %v1295 = vpack.c.b16 %v903, %v899
    %v1296 = vpack.c.b16 %v904, %v900
    %v1297 = vpack.c.b16 %v905, %v901
    %v1298 = vpack.c.b16 %v910, %v906
    %v1299 = vpack.c.b16 %v911, %v907
    %v1300 = vpack.c.b16 %v912, %v908
    %v1301 = vpack.c.b16 %v913, %v909
    %v1302 = vpack.c.b16 %v918, %v914
    %v1303 = vpack.c.b16 %v919, %v915
    %v1304 = vpack.c.b16 %v920, %v916
    %v1305 = vpack.c.b16 %v921, %v917
    %v1306 = vpack.c.b16 %v926, %v922
    %v1307 = vpack.c.b16 %v927, %v923
    %v1308 = vpack.c.b16 %v928, %v924
    %v1309 = vpack.c.b16 %v929, %v925
    %v1310 = vpack.c.b16 %v934, %v930
    %v1311 = vpack.c.b16 %v935, %v931
    %v1312 = vpack.c.b16 %v936, %v932
    %v1313 = vpack.c.b16 %v937, %v933
    %v1314 = vpack.c.b16 %v942, %v938
    %v1315 = vpack.c.b16 %v943, %v939
    %v1316 = vpack.c.b16 %v944, %v940
    %v1317 = vpack.c.b16 %v945, %v941
    %v1318 = vpack.c.b16 %v950, %v946
    %v1319 = vpack.c.b16 %v951, %v947
    %v1320 = vpack.c.b16 %v952, %v948
    %v1321 = vpack.c.b16 %v953, %v949
    %v1322 = vpack.c.b16 %v958, %v954
    %v1323 = vpack.c.b16 %v959, %v955
    %v1324 = vpack.c.b16 %v960, %v956
    %v1325 = vpack.c.b16 %v961, %v957
    %v1326 = vpack.c.b16 %v966, %v962
    %v1327 = vpack.c.b16 %v967, %v963
    %v1328 = vpack.c.b16 %v968, %v964
    %v1329 = vpack.c.b16 %v969, %v965
    %v1330 = vpack.c.b16 %v974, %v970
    %v1331 = vpack.c.b16 %v975, %v971
    %v1332 = vpack.c.b16 %v976, %v972
    %v1333 = vpack.c.b16 %v977, %v973
    %v1334 = vpack.c.b16 %v982, %v978
    %v1335 = vpack.c.b16 %v983, %v979
    %v1336 = vpack.c.b16 %v984, %v980
    %v1337 = vpack.c.b16 %v985, %v981
    %v1338 = vpack.c.b16 %v990, %v986
    %v1339 = vpack.c.b16 %v991, %v987
    %v1340 = vpack.c.b16 %v992, %v988
    %v1341 = vpack.c.b16 %v993, %v989
    %v1342 = vpack.c.b16 %v998, %v994
    %v1343 = vpack.c.b16 %v999, %v995
    %v1344 = vpack.c.b16 %v1000, %v996
    %v1345 = vpack.c.b16 %v1001, %v997
    %v1346 = vpack.c.b16 %v1006, %v1002
    %v1347 = vpack.c.b16 %v1007, %v1003
    %v1348 = vpack.c.b16 %v1008, %v1004
    %v1349 = vpack.c.b16 %v1009, %v1005
    %v1350 = vpack.c.b16 %v1014, %v1010
    %v1351 = vpack.c.b16 %v1015, %v1011
    %v1352 = vpack.c.b16 %v1016, %v1012
    %v1353 = vpack.c.b16 %v1017, %v1013
    %v1354 = vpack.c.b16 %v1022, %v1018
    %v1355 = vpack.c.b16 %v1023, %v1019
    %v1356 = vpack.c.b16 %v1024, %v1020
    %v1357 = vpack.c.b16 %v1025, %v1021
    %v1358 = vpack.c.b16 %v1030, %v1026
    %v1359 = vpack.c.b16 %v1031, %v1027
    %v1360 = vpack.c.b16 %v1032, %v1028
    %v1361 = vpack.c.b16 %v1033, %v1029
    %v1362 = vpack.c.b16 %v1038, %v1034
    %v1363 = vpack.c.b16 %v1039, %v1035
    %v1364 = vpack.c.b16 %v1040, %v1036
    %v1365 = vpack.c.b16 %v1041, %v1037
    %v1366 = vpack.c.b16 %v1046, %v1042
    %v1367 = vpack.c.b16 %v1047, %v1043
    %v1368 = vpack.c.b16 %v1048, %v1044
    %v1369 = vpack.c.b16 %v1049, %v1045
    %v1370 = vpack.c.b16 %v1054, %v1050
    %v1371 = vpack.c.b16 %v1055, %v1051
    %v1372 = vpack.c.b16 %v1056, %v1052
    %v1373 = vpack.c.b16 %v1057, %v1053
    %v1374 = vpack.c.b16 %v1062, %v1058
    %v1375 = vpack.c.b16 %v1063, %v1059
    %v1376 = vpack.c.b16 %v1064, %v1060
    %v1377 = vpack.c.b16 %v1065, %v1061
    %v1378 = vpack.c.b16 %v1070, %v1066
    %v1379 = vpack.c.b16 %v1071, %v1067
    %v1380 = vpack.c.b16 %v1072, %v1068
    %v1381 = vpack.c.b16 %v1073, %v1069
    %v1382 = vpack.c.b16 %v1078, %v1074
    %v1383 = vpack.c.b16 %v1079, %v1075
    %v1384 = vpack.c.b16 %v1080, %v1076
    %v1385 = vpack.c.b16 %v1081, %v1077
    %v1386 = vpack.c.b16 %v1086, %v1082
    %v1387 = vpack.c.b16 %v1087, %v1083
    %v1388 = vpack.c.b16 %v1088, %v1084
    %v1389 = vpack.c.b16 %v1089, %v1085
    %v1390 = vpack.c.b16 %v1094, %v1090
    %v1391 = vpack.c.b16 %v1095, %v1091
    %v1392 = vpack.c.b16 %v1096, %v1092
    %v1393 = vpack.c.b16 %v1097, %v1093
    %v1394 = vpack.c.b16 %v1102, %v1098
    %v1395 = vpack.c.b16 %v1103, %v1099
    %v1396 = vpack.c.b16 %v1104, %v1100
    %v1397 = vpack.c.b16 %v1105, %v1101
    %v1398 = vpack.c.b16 %v1110, %v1106
    %v1399 = vpack.c.b16 %v1111, %v1107
    %v1400 = vpack.c.b16 %v1112, %v1108
    %v1401 = vpack.c.b16 %v1113, %v1109
    %v1402 = vpack.c.b16 %v1118, %v1114
    %v1403 = vpack.c.b16 %v1119, %v1115
    %v1404 = vpack.c.b16 %v1120, %v1116
    %v1405 = vpack.c.b16 %v1121, %v1117
    %v1406 = vpack.c.b16 %v1126, %v1122
    %v1407 = vpack.c.b16 %v1127, %v1123
    %v1408 = vpack.c.b16 %v1128, %v1124
    %v1409 = vpack.c.b16 %v1129, %v1125
    %v1410 = vpack.c.b16 %v1134, %v1130
    %v1411 = vpack.c.b16 %v1135, %v1131
    %v1412 = vpack.c.b16 %v1136, %v1132
    %v1413 = vpack.c.b16 %v1137, %v1133
    %v1414 = vpack.c.b16 %v1142, %v1138
    %v1415 = vpack.c.b16 %v1143, %v1139
    %v1416 = vpack.c.b16 %v1144, %v1140
    %v1417 = vpack.c.b16 %v1145, %v1141
    %v1418 = vpack.c.b16 %v1150, %v1146
    %v1419 = vpack.c.b16 %v1151, %v1147
    %v1420 = vpack.c.b16 %v1152, %v1148
    %v1421 = vpack.c.b16 %v1153, %v1149
    %v1422 = vpack.c.b16 %v1158, %v1154
    %v1423 = vpack.c.b16 %v1159, %v1155
    %v1424 = vpack.c.b16 %v1160, %v1156
    %v1425 = vpack.c.b16 %v1161, %v1157
    %v1426 = vpack.c.b16 %v1166, %v1162
    %v1427 = vpack.c.b16 %v1167, %v1163
    %v1428 = vpack.c.b16 %v1168, %v1164
    %v1429 = vpack.c.b16 %v1169, %v1165
    %v1430 = vpack.c.b16 %v1174, %v1170
    %v1431 = vpack.c.b16 %v1175, %v1171
    %v1432 = vpack.c.b16 %v1176, %v1172
    %v1433 = vpack.c.b16 %v1177, %v1173
    %1690 = vmatprep.subr.bf16.mxu0 %v1207
    %1691 = vmatpush1.bf16.msra.mxu0 %v1206
    %1692 = vmatprep.subr.bf16.mxu0 %v1203
    %1693 = vmatpush1.bf16.msra.mxu0 %v1202
    %1694 = vmatprep.subr.bf16.mxu0 %v1199
    %1695 = vmatpush1.bf16.msra.mxu0 %v1198
    %1696 = vmatprep.subr.bf16.mxu0 %v1195
    %1697 = vmatpush1.bf16.msra.mxu0 %v1194
    %1698 = vmatprep.subr.bf16.mxu0 %v1191
    %1699 = vmatpush1.bf16.msra.mxu0 %v1190
    %1700 = vmatprep.subr.bf16.mxu0 %v1187
    %1701 = vmatpush1.bf16.msra.mxu0 %v1186
    %1702 = vmatprep.subr.bf16.mxu0 %v1183
    %1703 = vmatpush1.bf16.msra.mxu0 %v1182
    %1704 = vmatprep.subr.bf16.mxu0 %v1179
    %1705 = vmatpush1.bf16.msra.mxu0 %v1178
    %1706 = vmatprep.subr.bf16.mxu0 %v1239
    %1707 = vmatpush2.bf16.msra.mxu0 %v1238
    %1708 = vmatprep.subr.bf16.mxu0 %v1235
    %1709 = vmatpush2.bf16.msra.mxu0 %v1234
    %1710 = vmatprep.subr.bf16.mxu0 %v1231
    %1711 = vmatpush2.bf16.msra.mxu0 %v1230
    %1712 = vmatprep.subr.bf16.mxu0 %v1227
    %1713 = vmatpush2.bf16.msra.mxu0 %v1226
    %1714 = vmatprep.subr.bf16.mxu0 %v1223
    %1715 = vmatpush2.bf16.msra.mxu0 %v1222
    %1716 = vmatprep.subr.bf16.mxu0 %v1219
    %1717 = vmatpush2.bf16.msra.mxu0 %v1218
    %1718 = vmatprep.subr.bf16.mxu0 %v1215
    %1719 = vmatpush2.bf16.msra.mxu0 %v1214
    %1720 = vmatprep.subr.bf16.mxu0 %v1211
    %1721 = vmatpush2.bf16.msra.mxu0 %v1210
    %1722 = vmatprep.mubr.bf16.mxu0 %v390
    %1723 = vmatmul.mubr.bf16.gmra.mxu0 %v376
    %v1724 = vpop.f32.mrf.mxu0
    %v1725 = vadd.f32 %v335, %v1724
    %v1726 = vpop.f32.mrf.mxu0
    %v1727 = vadd.f32 %v339, %v1726
    %v1728 = vpop.f32.mrf.mxu0
    %v1729 = vpop.f32.mrf.mxu0
    %1730 = vdwg.mxu0
    %1731 = vmatprep.subr.bf16.mxu0 %v1271
    %1732 = vmatpush1.bf16.msra.mxu0 %v1270
    %1733 = vmatprep.subr.bf16.mxu0 %v1267
    %1734 = vmatpush1.bf16.msra.mxu0 %v1266
    %1735 = vmatprep.subr.bf16.mxu0 %v1263
    %1736 = vmatpush1.bf16.msra.mxu0 %v1262
    %1737 = vmatprep.subr.bf16.mxu0 %v1259
    %1738 = vmatpush1.bf16.msra.mxu0 %v1258
    %1739 = vmatprep.subr.bf16.mxu0 %v1255
    %1740 = vmatpush1.bf16.msra.mxu0 %v1254
    %1741 = vmatprep.subr.bf16.mxu0 %v1251
    %1742 = vmatpush1.bf16.msra.mxu0 %v1250
    %1743 = vmatprep.subr.bf16.mxu0 %v1247
    %1744 = vmatpush1.bf16.msra.mxu0 %v1246
    %1745 = vmatprep.subr.bf16.mxu0 %v1243
    %1746 = vmatpush1.bf16.msra.mxu0 %v1242
    %1747 = vmatprep.subr.bf16.mxu0 %v1303
    %1748 = vmatpush2.bf16.msra.mxu0 %v1302
    %1749 = vmatprep.subr.bf16.mxu0 %v1299
    %1750 = vmatpush2.bf16.msra.mxu0 %v1298
    %1751 = vmatprep.subr.bf16.mxu0 %v1295
    %1752 = vmatpush2.bf16.msra.mxu0 %v1294
    %1753 = vmatprep.subr.bf16.mxu0 %v1291
    %1754 = vmatpush2.bf16.msra.mxu0 %v1290
    %1755 = vmatprep.subr.bf16.mxu0 %v1287
    %1756 = vmatpush2.bf16.msra.mxu0 %v1286
    %1757 = vmatprep.subr.bf16.mxu0 %v1283
    %1758 = vmatpush2.bf16.msra.mxu0 %v1282
    %1759 = vmatprep.subr.bf16.mxu0 %v1279
    %1760 = vmatpush2.bf16.msra.mxu0 %v1278
    %1761 = vmatprep.subr.bf16.mxu0 %v1275
    %1762 = vmatpush2.bf16.msra.mxu0 %v1274
    %1763 = vmatprep.mubr.bf16.mxu0 %v400
    %1764 = vmatmul.mubr.bf16.gmra.mxu0 %v398
    %v1765 = vpop.f32.mrf.mxu0
    %v1766 = vadd.f32 %v1725, %v1765
    %v1767 = vpop.f32.mrf.mxu0
    %v1768 = vadd.f32 %v1727, %v1767
    %v1769 = vpop.f32.mrf.mxu0
    %v1770 = vpop.f32.mrf.mxu0
    %1771 = vdwg.mxu0
    %1772 = vmatprep.subr.bf16.mxu0 %v1335
    %1773 = vmatpush1.bf16.msra.mxu0 %v1334
    %1774 = vmatprep.subr.bf16.mxu0 %v1331
    %1775 = vmatpush1.bf16.msra.mxu0 %v1330
    %1776 = vmatprep.subr.bf16.mxu0 %v1327
    %1777 = vmatpush1.bf16.msra.mxu0 %v1326
    %1778 = vmatprep.subr.bf16.mxu0 %v1323
    %1779 = vmatpush1.bf16.msra.mxu0 %v1322
    %1780 = vmatprep.subr.bf16.mxu0 %v1319
    %1781 = vmatpush1.bf16.msra.mxu0 %v1318
    %1782 = vmatprep.subr.bf16.mxu0 %v1315
    %1783 = vmatpush1.bf16.msra.mxu0 %v1314
    %1784 = vmatprep.subr.bf16.mxu0 %v1311
    %1785 = vmatpush1.bf16.msra.mxu0 %v1310
    %1786 = vmatprep.subr.bf16.mxu0 %v1307
    %1787 = vmatpush1.bf16.msra.mxu0 %v1306
    %1788 = vmatprep.subr.bf16.mxu0 %v1367
    %1789 = vmatpush2.bf16.msra.mxu0 %v1366
    %1790 = vmatprep.subr.bf16.mxu0 %v1363
    %1791 = vmatpush2.bf16.msra.mxu0 %v1362
    %1792 = vmatprep.subr.bf16.mxu0 %v1359
    %1793 = vmatpush2.bf16.msra.mxu0 %v1358
    %1794 = vmatprep.subr.bf16.mxu0 %v1355
    %1795 = vmatpush2.bf16.msra.mxu0 %v1354
    %1796 = vmatprep.subr.bf16.mxu0 %v1351
    %1797 = vmatpush2.bf16.msra.mxu0 %v1350
    %1798 = vmatprep.subr.bf16.mxu0 %v1347
    %1799 = vmatpush2.bf16.msra.mxu0 %v1346
    %1800 = vmatprep.subr.bf16.mxu0 %v1343
    %1801 = vmatpush2.bf16.msra.mxu0 %v1342
    %1802 = vmatprep.subr.bf16.mxu0 %v1339
    %1803 = vmatpush2.bf16.msra.mxu0 %v1338
    %1804 = vmatprep.mubr.bf16.mxu0 %v397
    %1805 = vmatmul.mubr.bf16.gmra.mxu0 %v383
    %v1806 = vpop.f32.mrf.mxu0
    %v1807 = vadd.f32 %v1766, %v1806
    %v1808 = vpop.f32.mrf.mxu0
    %v1809 = vadd.f32 %v1768, %v1808
    %v1810 = vpop.f32.mrf.mxu0
    %v1811 = vpop.f32.mrf.mxu0
    %1812 = vdwg.mxu0
    %1813 = vmatprep.subr.bf16.mxu0 %v1399
    %1814 = vmatpush1.bf16.msra.mxu0 %v1398
    %1815 = vmatprep.subr.bf16.mxu0 %v1395
    %1816 = vmatpush1.bf16.msra.mxu0 %v1394
    %1817 = vmatprep.subr.bf16.mxu0 %v1391
    %1818 = vmatpush1.bf16.msra.mxu0 %v1390
    %1819 = vmatprep.subr.bf16.mxu0 %v1387
    %1820 = vmatpush1.bf16.msra.mxu0 %v1386
    %1821 = vmatprep.subr.bf16.mxu0 %v1383
    %1822 = vmatpush1.bf16.msra.mxu0 %v1382
    %1823 = vmatprep.subr.bf16.mxu0 %v1379
    %1824 = vmatpush1.bf16.msra.mxu0 %v1378
    %1825 = vmatprep.subr.bf16.mxu0 %v1375
    %1826 = vmatpush1.bf16.msra.mxu0 %v1374
    %1827 = vmatprep.subr.bf16.mxu0 %v1371
    %1828 = vmatpush1.bf16.msra.mxu0 %v1370
    %1829 = vmatprep.subr.bf16.mxu0 %v1431
    %1830 = vmatpush2.bf16.msra.mxu0 %v1430
    %1831 = vmatprep.subr.bf16.mxu0 %v1427
    %1832 = vmatpush2.bf16.msra.mxu0 %v1426
    %1833 = vmatprep.subr.bf16.mxu0 %v1423
    %1834 = vmatpush2.bf16.msra.mxu0 %v1422
    %1835 = vmatprep.subr.bf16.mxu0 %v1419
    %1836 = vmatpush2.bf16.msra.mxu0 %v1418
    %1837 = vmatprep.subr.bf16.mxu0 %v1415
    %1838 = vmatpush2.bf16.msra.mxu0 %v1414
    %1839 = vmatprep.subr.bf16.mxu0 %v1411
    %1840 = vmatpush2.bf16.msra.mxu0 %v1410
    %1841 = vmatprep.subr.bf16.mxu0 %v1407
    %1842 = vmatpush2.bf16.msra.mxu0 %v1406
    %1843 = vmatprep.subr.bf16.mxu0 %v1403
    %1844 = vmatpush2.bf16.msra.mxu0 %v1402
    %1845 = vmatprep.mubr.bf16.mxu0 %v401
    %1846 = vmatmul.mubr.bf16.gmra.mxu0 %v399
    %v1847 = vpop.f32.mrf.mxu0
    %v1848 = vadd.f32 %v1807, %v1847
    %v1849 = vpop.f32.mrf.mxu0
    %v1850 = vadd.f32 %v1809, %v1849
    %v1851 = vpop.f32.mrf.mxu0
    %v1852 = vpop.f32.mrf.mxu0
    %1853 = vdwg.mxu0
    %1854 = vmatprep.subr.bf16.mxu0 %v1209
    %1855 = vmatpush1.bf16.msra.mxu0 %v1208
    %1856 = vmatprep.subr.bf16.mxu0 %v1205
    %1857 = vmatpush1.bf16.msra.mxu0 %v1204
    %1858 = vmatprep.subr.bf16.mxu0 %v1201
    %1859 = vmatpush1.bf16.msra.mxu0 %v1200
    %1860 = vmatprep.subr.bf16.mxu0 %v1197
    %1861 = vmatpush1.bf16.msra.mxu0 %v1196
    %1862 = vmatprep.subr.bf16.mxu0 %v1193
    %1863 = vmatpush1.bf16.msra.mxu0 %v1192
    %1864 = vmatprep.subr.bf16.mxu0 %v1189
    %1865 = vmatpush1.bf16.msra.mxu0 %v1188
    %1866 = vmatprep.subr.bf16.mxu0 %v1185
    %1867 = vmatpush1.bf16.msra.mxu0 %v1184
    %1868 = vmatprep.subr.bf16.mxu0 %v1181
    %1869 = vmatpush1.bf16.msra.mxu0 %v1180
    %1870 = vmatprep.subr.bf16.mxu0 %v1241
    %1871 = vmatpush2.bf16.msra.mxu0 %v1240
    %1872 = vmatprep.subr.bf16.mxu0 %v1237
    %1873 = vmatpush2.bf16.msra.mxu0 %v1236
    %1874 = vmatprep.subr.bf16.mxu0 %v1233
    %1875 = vmatpush2.bf16.msra.mxu0 %v1232
    %1876 = vmatprep.subr.bf16.mxu0 %v1229
    %1877 = vmatpush2.bf16.msra.mxu0 %v1228
    %1878 = vmatprep.subr.bf16.mxu0 %v1225
    %1879 = vmatpush2.bf16.msra.mxu0 %v1224
    %1880 = vmatprep.subr.bf16.mxu0 %v1221
    %1881 = vmatpush2.bf16.msra.mxu0 %v1220
    %1882 = vmatprep.subr.bf16.mxu0 %v1217
    %1883 = vmatpush2.bf16.msra.mxu0 %v1216
    %1884 = vmatprep.subr.bf16.mxu0 %v1213
    %1885 = vmatpush2.bf16.msra.mxu0 %v1212
    %1886 = vmatprep.mubr.bf16.mxu0 %v390
    %1887 = vmatmul.mubr.bf16.gmra.mxu0 %v376
    %v1888 = vpop.f32.mrf.mxu0
    %v1889 = vadd.f32 %v343, %v1888
    %v1890 = vpop.f32.mrf.mxu0
    %v1891 = vadd.f32 %v347, %v1890
    %v1892 = vpop.f32.mrf.mxu0
    %v1893 = vpop.f32.mrf.mxu0
    %1894 = vdwg.mxu0
    %1895 = vmatprep.subr.bf16.mxu0 %v1273
    %1896 = vmatpush1.bf16.msra.mxu0 %v1272
    %1897 = vmatprep.subr.bf16.mxu0 %v1269
    %1898 = vmatpush1.bf16.msra.mxu0 %v1268
    %1899 = vmatprep.subr.bf16.mxu0 %v1265
    %1900 = vmatpush1.bf16.msra.mxu0 %v1264
    %1901 = vmatprep.subr.bf16.mxu0 %v1261
    %1902 = vmatpush1.bf16.msra.mxu0 %v1260
    %1903 = vmatprep.subr.bf16.mxu0 %v1257
    %1904 = vmatpush1.bf16.msra.mxu0 %v1256
    %1905 = vmatprep.subr.bf16.mxu0 %v1253
    %1906 = vmatpush1.bf16.msra.mxu0 %v1252
    %1907 = vmatprep.subr.bf16.mxu0 %v1249
    %1908 = vmatpush1.bf16.msra.mxu0 %v1248
    %1909 = vmatprep.subr.bf16.mxu0 %v1245
    %1910 = vmatpush1.bf16.msra.mxu0 %v1244
    %1911 = vmatprep.subr.bf16.mxu0 %v1305
    %1912 = vmatpush2.bf16.msra.mxu0 %v1304
    %1913 = vmatprep.subr.bf16.mxu0 %v1301
    %1914 = vmatpush2.bf16.msra.mxu0 %v1300
    %1915 = vmatprep.subr.bf16.mxu0 %v1297
    %1916 = vmatpush2.bf16.msra.mxu0 %v1296
    %1917 = vmatprep.subr.bf16.mxu0 %v1293
    %1918 = vmatpush2.bf16.msra.mxu0 %v1292
    %1919 = vmatprep.subr.bf16.mxu0 %v1289
    %1920 = vmatpush2.bf16.msra.mxu0 %v1288
    %1921 = vmatprep.subr.bf16.mxu0 %v1285
    %1922 = vmatpush2.bf16.msra.mxu0 %v1284
    %1923 = vmatprep.subr.bf16.mxu0 %v1281
    %1924 = vmatpush2.bf16.msra.mxu0 %v1280
    %1925 = vmatprep.subr.bf16.mxu0 %v1277
    %1926 = vmatpush2.bf16.msra.mxu0 %v1276
    %1927 = vmatprep.mubr.bf16.mxu0 %v400
    %1928 = vmatmul.mubr.bf16.gmra.mxu0 %v398
    %v1929 = vpop.f32.mrf.mxu0
    %v1930 = vadd.f32 %v1889, %v1929
    %v1931 = vpop.f32.mrf.mxu0
    %v1932 = vadd.f32 %v1891, %v1931
    %v1933 = vpop.f32.mrf.mxu0
    %v1934 = vpop.f32.mrf.mxu0
    %1935 = vdwg.mxu0
    %1936 = vmatprep.subr.bf16.mxu0 %v1337
    %1937 = vmatpush1.bf16.msra.mxu0 %v1336
    %1938 = vmatprep.subr.bf16.mxu0 %v1333
    %1939 = vmatpush1.bf16.msra.mxu0 %v1332
    %1940 = vmatprep.subr.bf16.mxu0 %v1329
    %1941 = vmatpush1.bf16.msra.mxu0 %v1328
    %1942 = vmatprep.subr.bf16.mxu0 %v1325
    %1943 = vmatpush1.bf16.msra.mxu0 %v1324
    %1944 = vmatprep.subr.bf16.mxu0 %v1321
    %1945 = vmatpush1.bf16.msra.mxu0 %v1320
    %1946 = vmatprep.subr.bf16.mxu0 %v1317
    %1947 = vmatpush1.bf16.msra.mxu0 %v1316
    %1948 = vmatprep.subr.bf16.mxu0 %v1313
    %1949 = vmatpush1.bf16.msra.mxu0 %v1312
    %1950 = vmatprep.subr.bf16.mxu0 %v1309
    %1951 = vmatpush1.bf16.msra.mxu0 %v1308
    %1952 = vmatprep.subr.bf16.mxu0 %v1369
    %1953 = vmatpush2.bf16.msra.mxu0 %v1368
    %1954 = vmatprep.subr.bf16.mxu0 %v1365
    %1955 = vmatpush2.bf16.msra.mxu0 %v1364
    %1956 = vmatprep.subr.bf16.mxu0 %v1361
    %1957 = vmatpush2.bf16.msra.mxu0 %v1360
    %1958 = vmatprep.subr.bf16.mxu0 %v1357
    %1959 = vmatpush2.bf16.msra.mxu0 %v1356
    %1960 = vmatprep.subr.bf16.mxu0 %v1353
    %1961 = vmatpush2.bf16.msra.mxu0 %v1352
    %1962 = vmatprep.subr.bf16.mxu0 %v1349
    %1963 = vmatpush2.bf16.msra.mxu0 %v1348
    %1964 = vmatprep.subr.bf16.mxu0 %v1345
    %1965 = vmatpush2.bf16.msra.mxu0 %v1344
    %1966 = vmatprep.subr.bf16.mxu0 %v1341
    %1967 = vmatpush2.bf16.msra.mxu0 %v1340
    %1968 = vmatprep.mubr.bf16.mxu0 %v397
    %1969 = vmatmul.mubr.bf16.gmra.mxu0 %v383
    %v1970 = vpop.f32.mrf.mxu0
    %v1971 = vadd.f32 %v1930, %v1970
    %v1972 = vpop.f32.mrf.mxu0
    %v1973 = vadd.f32 %v1932, %v1972
    %v1974 = vpop.f32.mrf.mxu0
    %v1975 = vpop.f32.mrf.mxu0
    %1976 = vdwg.mxu0
    %1977 = vmatprep.subr.bf16.mxu0 %v1401
    %1978 = vmatpush1.bf16.msra.mxu0 %v1400
    %1979 = vmatprep.subr.bf16.mxu0 %v1397
    %1980 = vmatpush1.bf16.msra.mxu0 %v1396
    %1981 = vmatprep.subr.bf16.mxu0 %v1393
    %1982 = vmatpush1.bf16.msra.mxu0 %v1392
    %1983 = vmatprep.subr.bf16.mxu0 %v1389
    %1984 = vmatpush1.bf16.msra.mxu0 %v1388
    %1985 = vmatprep.subr.bf16.mxu0 %v1385
    %1986 = vmatpush1.bf16.msra.mxu0 %v1384
    %1987 = vmatprep.subr.bf16.mxu0 %v1381
    %1988 = vmatpush1.bf16.msra.mxu0 %v1380
    %1989 = vmatprep.subr.bf16.mxu0 %v1377
    %1990 = vmatpush1.bf16.msra.mxu0 %v1376
    %1991 = vmatprep.subr.bf16.mxu0 %v1373
    %1992 = vmatpush1.bf16.msra.mxu0 %v1372
    %1993 = vmatprep.subr.bf16.mxu0 %v1433
    %1994 = vmatpush2.bf16.msra.mxu0 %v1432
    %1995 = vmatprep.subr.bf16.mxu0 %v1429
    %1996 = vmatpush2.bf16.msra.mxu0 %v1428
    %1997 = vmatprep.subr.bf16.mxu0 %v1425
    %1998 = vmatpush2.bf16.msra.mxu0 %v1424
    %1999 = vmatprep.subr.bf16.mxu0 %v1421
    %2000 = vmatpush2.bf16.msra.mxu0 %v1420
    %2001 = vmatprep.subr.bf16.mxu0 %v1417
    %2002 = vmatpush2.bf16.msra.mxu0 %v1416
    %2003 = vmatprep.subr.bf16.mxu0 %v1413
    %2004 = vmatpush2.bf16.msra.mxu0 %v1412
    %2005 = vmatprep.subr.bf16.mxu0 %v1409
    %2006 = vmatpush2.bf16.msra.mxu0 %v1408
    %2007 = vmatprep.subr.bf16.mxu0 %v1405
    %2008 = vmatpush2.bf16.msra.mxu0 %v1404
    %2009 = vmatprep.mubr.bf16.mxu0 %v401
    %2010 = vmatmul.mubr.bf16.gmra.mxu0 %v399
    %v2011 = vpop.f32.mrf.mxu0
    %v2012 = vadd.f32 %v1971, %v2011
    %v2013 = vpop.f32.mrf.mxu0
    %v2014 = vadd.f32 %v1973, %v2013
    %v2015 = vpop.f32.mrf.mxu0
    %v2016 = vpop.f32.mrf.mxu0
    %2017 = vdwg.mxu0
    %v2018 = vmax.f32 %v1848, 0.0
    %v2019 = vmax.f32 %v1850, 0.0
    %v2020 = vmax.f32 %v2012, 0.0
    %v2021 = vmax.f32 %v2014, 0.0
    %v2022 = vpack.c.bf16 %v2018, %v2018
    %v2023 = vpack.c.bf16 %v2019, %v2019
    %v2024 = vpack.c.bf16 %v2020, %v2020
    %v2025 = vpack.c.bf16 %v2021, %v2021
    %v2026 = vld [vmem:[#allocation8] sm:$0xf]
    %v2027 = vld [vmem:[#allocation8 + $0x4] sm:$0xf]
    %v2028 = vld [vmem:[#allocation8 + $0x8] sm:$0xf]
    %v2029 = vld [vmem:[#allocation8 + $0xc] sm:$0xf]
    %v2030 = vld [vmem:[#allocation8 + $0x10] sm:$0xf]
    %v2031 = vld [vmem:[#allocation8 + $0x14] sm:$0xf]
    %v2032 = vld [vmem:[#allocation8 + $0x18] sm:$0xf]
    %v2033 = vld [vmem:[#allocation8 + $0x1c] sm:$0xf]
    %v2034 = vld [vmem:[#allocation8 + $0x20] sm:$0xf]
    %v2035 = vld [vmem:[#allocation8 + $0x24] sm:$0xf]
    %v2036 = vld [vmem:[#allocation8 + $0x28] sm:$0xf]
    %v2037 = vld [vmem:[#allocation8 + $0x2c] sm:$0xf]
    %v2038 = vld [vmem:[#allocation8 + $0x30] sm:$0xf]
    %v2039 = vld [vmem:[#allocation8 + $0x34] sm:$0xf]
    %v2040 = vld [vmem:[#allocation8 + $0x38] sm:$0xf]
    %v2041 = vld [vmem:[#allocation8 + $0x3c] sm:$0xf]
    %v2042 = vld [vmem:[#allocation8 + $0x40] sm:$0xf]
    %v2043 = vld [vmem:[#allocation8 + $0x44] sm:$0xf]
    %v2044 = vld [vmem:[#allocation8 + $0x48] sm:$0xf]
    %v2045 = vld [vmem:[#allocation8 + $0x4c] sm:$0xf]
    %v2046 = vld [vmem:[#allocation8 + $0x50] sm:$0xf]
    %v2047 = vld [vmem:[#allocation8 + $0x54] sm:$0xf]
    %v2048 = vld [vmem:[#allocation8 + $0x58] sm:$0xf]
    %v2049 = vld [vmem:[#allocation8 + $0x5c] sm:$0xf]
    %v2050 = vld [vmem:[#allocation8 + $0x60] sm:$0xf]
    %v2051 = vld [vmem:[#allocation8 + $0x64] sm:$0xf]
    %v2052 = vld [vmem:[#allocation8 + $0x68] sm:$0xf]
    %v2053 = vld [vmem:[#allocation8 + $0x6c] sm:$0xf]
    %v2054 = vld [vmem:[#allocation8 + $0x70] sm:$0xf]
    %v2055 = vld [vmem:[#allocation8 + $0x74] sm:$0xf]
    %v2056 = vld [vmem:[#allocation8 + $0x78] sm:$0xf]
    %v2057 = vld [vmem:[#allocation8 + $0x7c] sm:$0xf]
    %v2058 = vld [vmem:[#allocation8 + $0x80] sm:$0xf]
    %v2059 = vld [vmem:[#allocation8 + $0x84] sm:$0xf]
    %v2060 = vld [vmem:[#allocation8 + $0x88] sm:$0xf]
    %v2061 = vld [vmem:[#allocation8 + $0x8c] sm:$0xf]
    %v2062 = vld [vmem:[#allocation8 + $0x90] sm:$0xf]
    %v2063 = vld [vmem:[#allocation8 + $0x94] sm:$0xf]
    %v2064 = vld [vmem:[#allocation8 + $0x98] sm:$0xf]
    %v2065 = vld [vmem:[#allocation8 + $0x9c] sm:$0xf]
    %v2066 = vld [vmem:[#allocation8 + $0xa0] sm:$0xf]
    %v2067 = vld [vmem:[#allocation8 + $0xa4] sm:$0xf]
    %v2068 = vld [vmem:[#allocation8 + $0xa8] sm:$0xf]
    %v2069 = vld [vmem:[#allocation8 + $0xac] sm:$0xf]
    %v2070 = vld [vmem:[#allocation8 + $0xb0] sm:$0xf]
    %v2071 = vld [vmem:[#allocation8 + $0xb4] sm:$0xf]
    %v2072 = vld [vmem:[#allocation8 + $0xb8] sm:$0xf]
    %v2073 = vld [vmem:[#allocation8 + $0xbc] sm:$0xf]
    %v2074 = vld [vmem:[#allocation8 + $0xc0] sm:$0xf]
    %v2075 = vld [vmem:[#allocation8 + $0xc4] sm:$0xf]
    %v2076 = vld [vmem:[#allocation8 + $0xc8] sm:$0xf]
    %v2077 = vld [vmem:[#allocation8 + $0xcc] sm:$0xf]
    %v2078 = vld [vmem:[#allocation8 + $0xd0] sm:$0xf]
    %v2079 = vld [vmem:[#allocation8 + $0xd4] sm:$0xf]
    %v2080 = vld [vmem:[#allocation8 + $0xd8] sm:$0xf]
    %v2081 = vld [vmem:[#allocation8 + $0xdc] sm:$0xf]
    %v2082 = vld [vmem:[#allocation8 + $0xe0] sm:$0xf]
    %v2083 = vld [vmem:[#allocation8 + $0xe4] sm:$0xf]
    %v2084 = vld [vmem:[#allocation8 + $0xe8] sm:$0xf]
    %v2085 = vld [vmem:[#allocation8 + $0xec] sm:$0xf]
    %v2086 = vld [vmem:[#allocation8 + $0xf0] sm:$0xf]
    %v2087 = vld [vmem:[#allocation8 + $0xf4] sm:$0xf]
    %v2088 = vld [vmem:[#allocation8 + $0xf8] sm:$0xf]
    %v2089 = vld [vmem:[#allocation8 + $0xfc] sm:$0xf]
    %v2090 = vld [vmem:[%s4] sm:$0x1]
    %v2092 = vlaneseq
    %v2093 = vshrl.u32 %v2092, 7
    %v2094 = vsub.s32 0, %v2093
    %v2095 = vrot.slane %v2090, %v2094
    %v2161 = vunpack.c.l.b16 %v2026
    %v2162 = vunpack.c.l.b16 %v2027
    %v2163 = vunpack.c.l.b16 %v2028
    %v2164 = vunpack.c.l.b16 %v2029
    %v2165 = vunpack.c.l.b16 %v2030
    %v2166 = vunpack.c.l.b16 %v2031
    %v2167 = vunpack.c.l.b16 %v2032
    %v2168 = vunpack.c.l.b16 %v2033
    %v2169 = vunpack.c.l.b16 %v2034
    %v2170 = vunpack.c.l.b16 %v2035
    %v2171 = vunpack.c.l.b16 %v2036
    %v2172 = vunpack.c.l.b16 %v2037
    %v2173 = vunpack.c.l.b16 %v2038
    %v2174 = vunpack.c.l.b16 %v2039
    %v2175 = vunpack.c.l.b16 %v2040
    %v2176 = vunpack.c.l.b16 %v2041
    %v2177 = vunpack.c.l.b16 %v2042
    %v2178 = vunpack.c.l.b16 %v2043
    %v2179 = vunpack.c.l.b16 %v2044
    %v2180 = vunpack.c.l.b16 %v2045
    %v2181 = vunpack.c.l.b16 %v2046
    %v2182 = vunpack.c.l.b16 %v2047
    %v2183 = vunpack.c.l.b16 %v2048
    %v2184 = vunpack.c.l.b16 %v2049
    %v2185 = vunpack.c.l.b16 %v2050
    %v2186 = vunpack.c.l.b16 %v2051
    %v2187 = vunpack.c.l.b16 %v2052
    %v2188 = vunpack.c.l.b16 %v2053
    %v2189 = vunpack.c.l.b16 %v2054
    %v2190 = vunpack.c.l.b16 %v2055
    %v2191 = vunpack.c.l.b16 %v2056
    %v2192 = vunpack.c.l.b16 %v2057
    %v2193 = vunpack.c.l.b16 %v2058
    %v2194 = vunpack.c.l.b16 %v2059
    %v2195 = vunpack.c.l.b16 %v2060
    %v2196 = vunpack.c.l.b16 %v2061
    %v2197 = vunpack.c.l.b16 %v2062
    %v2198 = vunpack.c.l.b16 %v2063
    %v2199 = vunpack.c.l.b16 %v2064
    %v2200 = vunpack.c.l.b16 %v2065
    %v2201 = vunpack.c.l.b16 %v2066
    %v2202 = vunpack.c.l.b16 %v2067
    %v2203 = vunpack.c.l.b16 %v2068
    %v2204 = vunpack.c.l.b16 %v2069
    %v2205 = vunpack.c.l.b16 %v2070
    %v2206 = vunpack.c.l.b16 %v2071
    %v2207 = vunpack.c.l.b16 %v2072
    %v2208 = vunpack.c.l.b16 %v2073
    %v2209 = vunpack.c.l.b16 %v2074
    %v2210 = vunpack.c.l.b16 %v2075
    %v2211 = vunpack.c.l.b16 %v2076
    %v2212 = vunpack.c.l.b16 %v2077
    %v2213 = vunpack.c.l.b16 %v2078
    %v2214 = vunpack.c.l.b16 %v2079
    %v2215 = vunpack.c.l.b16 %v2080
    %v2216 = vunpack.c.l.b16 %v2081
    %v2217 = vunpack.c.l.b16 %v2082
    %v2218 = vunpack.c.l.b16 %v2083
    %v2219 = vunpack.c.l.b16 %v2084
    %v2220 = vunpack.c.l.b16 %v2085
    %v2221 = vunpack.c.l.b16 %v2086
    %v2222 = vunpack.c.l.b16 %v2087
    %v2223 = vunpack.c.l.b16 %v2088
    %v2224 = vunpack.c.l.b16 %v2089
    %v2225 = vpack.c.b16 %v2162, %v2161
    %v2226 = vpack.c.b16 %v2164, %v2163
    %v2227 = vpack.c.b16 %v2166, %v2165
    %v2228 = vpack.c.b16 %v2168, %v2167
    %v2229 = vpack.c.b16 %v2170, %v2169
    %v2230 = vpack.c.b16 %v2172, %v2171
    %v2231 = vpack.c.b16 %v2174, %v2173
    %v2232 = vpack.c.b16 %v2176, %v2175
    %v2233 = vpack.c.b16 %v2178, %v2177
    %v2234 = vpack.c.b16 %v2180, %v2179
    %v2235 = vpack.c.b16 %v2182, %v2181
    %v2236 = vpack.c.b16 %v2184, %v2183
    %v2237 = vpack.c.b16 %v2186, %v2185
    %v2238 = vpack.c.b16 %v2188, %v2187
    %v2239 = vpack.c.b16 %v2190, %v2189
    %v2240 = vpack.c.b16 %v2192, %v2191
    %v2241 = vpack.c.b16 %v2194, %v2193
    %v2242 = vpack.c.b16 %v2196, %v2195
    %v2243 = vpack.c.b16 %v2198, %v2197
    %v2244 = vpack.c.b16 %v2200, %v2199
    %v2245 = vpack.c.b16 %v2202, %v2201
    %v2246 = vpack.c.b16 %v2204, %v2203
    %v2247 = vpack.c.b16 %v2206, %v2205
    %v2248 = vpack.c.b16 %v2208, %v2207
    %v2249 = vpack.c.b16 %v2210, %v2209
    %v2250 = vpack.c.b16 %v2212, %v2211
    %v2251 = vpack.c.b16 %v2214, %v2213
    %v2252 = vpack.c.b16 %v2216, %v2215
    %v2253 = vpack.c.b16 %v2218, %v2217
    %v2254 = vpack.c.b16 %v2220, %v2219
    %v2255 = vpack.c.b16 %v2222, %v2221
    %v2256 = vpack.c.b16 %v2224, %v2223
    %2289 = vmatprep.subr.bf16.mxu0 0
    %2290 = vmatpush1.bf16.msra.mxu0 %v2232
    %2291 = vmatprep.subr.bf16.mxu0 0
    %2292 = vmatpush1.bf16.msra.mxu0 %v2231
    %2293 = vmatprep.subr.bf16.mxu0 0
    %2294 = vmatpush1.bf16.msra.mxu0 %v2230
    %2295 = vmatprep.subr.bf16.mxu0 0
    %2296 = vmatpush1.bf16.msra.mxu0 %v2229
    %2297 = vmatprep.subr.bf16.mxu0 0
    %2298 = vmatpush1.bf16.msra.mxu0 %v2228
    %2299 = vmatprep.subr.bf16.mxu0 0
    %2300 = vmatpush1.bf16.msra.mxu0 %v2227
    %2301 = vmatprep.subr.bf16.mxu0 0
    %2302 = vmatpush1.bf16.msra.mxu0 %v2226
    %2303 = vmatprep.subr.bf16.mxu0 0
    %2304 = vmatpush1.bf16.msra.mxu0 %v2225
    %2305 = vmatprep.subr.bf16.mxu0 0
    %2306 = vmatpush2.bf16.msra.mxu0 %v2240
    %2307 = vmatprep.subr.bf16.mxu0 0
    %2308 = vmatpush2.bf16.msra.mxu0 %v2239
    %2309 = vmatprep.subr.bf16.mxu0 0
    %2310 = vmatpush2.bf16.msra.mxu0 %v2238
    %2311 = vmatprep.subr.bf16.mxu0 0
    %2312 = vmatpush2.bf16.msra.mxu0 %v2237
    %2313 = vmatprep.subr.bf16.mxu0 0
    %2314 = vmatpush2.bf16.msra.mxu0 %v2236
    %2315 = vmatprep.subr.bf16.mxu0 0
    %2316 = vmatpush2.bf16.msra.mxu0 %v2235
    %2317 = vmatprep.subr.bf16.mxu0 0
    %2318 = vmatpush2.bf16.msra.mxu0 %v2234
    %2319 = vmatprep.subr.bf16.mxu0 0
    %2320 = vmatpush2.bf16.msra.mxu0 %v2233
    %2321 = vmatprep.mubr.bf16.mxu0 %v2023
    %2322 = vmatmul.mubr.bf16.gmra.mxu0 %v2022
    %v2323 = vpop.f32.mrf.mxu0
    %v2324 = vadd.f32 %v2095, %v2323
    %v2325 = vpop.f32.mrf.mxu0
    %v2326 = vpop.f32.mrf.mxu0
    %v2327 = vpop.f32.mrf.mxu0
    %2328 = vdwg.mxu0
    %2329 = vmatprep.subr.bf16.mxu0 0
    %2330 = vmatpush1.bf16.msra.mxu0 %v2248
    %2331 = vmatprep.subr.bf16.mxu0 0
    %2332 = vmatpush1.bf16.msra.mxu0 %v2247
    %2333 = vmatprep.subr.bf16.mxu0 0
    %2334 = vmatpush1.bf16.msra.mxu0 %v2246
    %2335 = vmatprep.subr.bf16.mxu0 0
    %2336 = vmatpush1.bf16.msra.mxu0 %v2245
    %2337 = vmatprep.subr.bf16.mxu0 0
    %2338 = vmatpush1.bf16.msra.mxu0 %v2244
    %2339 = vmatprep.subr.bf16.mxu0 0
    %2340 = vmatpush1.bf16.msra.mxu0 %v2243
    %2341 = vmatprep.subr.bf16.mxu0 0
    %2342 = vmatpush1.bf16.msra.mxu0 %v2242
    %2343 = vmatprep.subr.bf16.mxu0 0
    %2344 = vmatpush1.bf16.msra.mxu0 %v2241
    %2345 = vmatprep.subr.bf16.mxu0 0
    %2346 = vmatpush2.bf16.msra.mxu0 %v2256
    %2347 = vmatprep.subr.bf16.mxu0 0
    %2348 = vmatpush2.bf16.msra.mxu0 %v2255
    %2349 = vmatprep.subr.bf16.mxu0 0
    %2350 = vmatpush2.bf16.msra.mxu0 %v2254
    %2351 = vmatprep.subr.bf16.mxu0 0
    %2352 = vmatpush2.bf16.msra.mxu0 %v2253
    %2353 = vmatprep.subr.bf16.mxu0 0
    %2354 = vmatpush2.bf16.msra.mxu0 %v2252
    %2355 = vmatprep.subr.bf16.mxu0 0
    %2356 = vmatpush2.bf16.msra.mxu0 %v2251
    %2357 = vmatprep.subr.bf16.mxu0 0
    %2358 = vmatpush2.bf16.msra.mxu0 %v2250
    %2359 = vmatprep.subr.bf16.mxu0 0
    %2360 = vmatpush2.bf16.msra.mxu0 %v2249
    %2361 = vmatprep.mubr.bf16.mxu0 %v2025
    %2362 = vmatmul.mubr.bf16.gmra.mxu0 %v2024
    %v2363 = vpop.f32.mrf.mxu0
    %v2364 = vadd.f32 %v2324, %v2363
    %v2365 = vpop.f32.mrf.mxu0
    %v2366 = vpop.f32.mrf.mxu0
    %v2367 = vpop.f32.mrf.mxu0
    %2368 = vdwg.mxu0
    %v2369 = vxor.u32 %v2364, 2147483648
    %v2370 = vmul.f32 %v2369, 1.442695
    %v2371 = vpow.pop %v2370
    %v2372 = vadd.f32 %v2371, 1.0
    %v2373 = vrcp.pop %v2372
    %v2374 = vmul.f32 1.0, %v2373
    %2375 = vst [vmem:[#allocation10] sm:$0x3] %v2374
    // Predicated region
    $region38: #{tpu_custom_call.1} parent=1 // pred_check
      _
    $region39: #{tpu_custom_call.1} parent=1 // pred_check_branch
      %2377 = sbr.rel (0) target = $region41
    $region40: #{tpu_custom_call.1} parent=1 // pred_region
      %s2379 = ssub.s32 32, 32
      %2380 = vsyncadd [#allocation4], %s2379
      %s2382 = sshll.u32 [#allocation10], 4
      %s2383 = int_to_ptr.vmem [resolvable:$true] %s2382
      %2385 = dma.vmem_to_hbm [thread:$0]  %s2383, 32, %s5, [#allocation4]
    $region41: #{tpu_custom_call.1} parent=1 // pred_fallthru
      _
    // Predicated region
    $region42: #{tpu_custom_call.1} parent=1 // pred_check
      _
    $region43: #{tpu_custom_call.1} parent=1 // pred_check_branch
      %2387 = sbr.rel (0) target = $region45
    $region44: #{tpu_custom_call.1} parent=1 // pred_region
      %2388 = dma.done [#allocation4], 32
    $region45: #{tpu_custom_call.1} parent=1 // pred_fallthru
      _
    %2389 = vsyncpa [#allocation3], 1
    %2390 = vsyncpa [#allocation6], 1
    %2391 = vsyncpa [#allocation9], 1
    %2392 = vsyncpa [#allocation4], 1

</llo_original>
